<compile_context>
chip_gen: v5e
topology: v5e:2x2
jax: 0.10.0
libtpu: 0.0.40
codegen_flags: <defaults>
</compile_context>

<pallas_src>
import functools

import jax
import jax.numpy as jnp
from jax.experimental import pallas as pl
from jax.experimental.pallas import tpu as pltpu


def _cdiv(a, b):
    return -(-a // b)


def _round_up(x, m):
    return ((x + m - 1) // m) * m


def _pad2(a, rows, cols):
    """Zero-pad a 2-D array up to (rows, cols)."""
    return jnp.pad(a, ((0, rows - a.shape[0]), (0, cols - a.shape[1])))


def _choose_tile(n, target, min_tiles=2, align=16):
    """Pad-aware row tiling: split n rows into >= min_tiles tiles of ~target rows."""
    n = max(int(n), 1)
    num_tiles = max(min_tiles, _cdiv(n, target))
    tile = _round_up(_cdiv(n, num_tiles), align)
    return tile, num_tiles


_MOSAIC_PARAMS = pltpu.CompilerParams(
    dimension_semantics=("parallel",),
    # Sized against v7x's 64 MiB physical VMEM; tiles are chosen well below.
    vmem_limit_bytes=32 * 1024 * 1024,
)


# ----------------------------------------------------------------------------
# Pass A: conv1 (patch matmul) + per-tile BatchNorm sum / sum-of-squares
# ----------------------------------------------------------------------------
def _conv1_stats_kernel(x_ref, w1_ref, b1_ref, h_ref, stats_ref, *, tile_n, n_true):
    # conv1 as a matmul over flattened 10x10 patches: bf16 operands, f32 acc.
    h = jnp.dot(x_ref[...], w1_ref[...], preferred_element_type=jnp.float32)
    h = h + b1_ref[...]                                    # (tile_n, H_pad) f32

    # Per-channel partial sums for the global BatchNorm batch statistics,
    # taken from the f32 accumulator BEFORE the bf16 store.  Rows beyond the
    # true row count (zero-padded tail) are masked so they do not bias stats.
    row = pl.program_id(0) * tile_n + jax.lax.broadcasted_iota(jnp.int32, h.shape, 0)
    hm = jnp.where(row < n_true, h, 0.0)
    s = jnp.sum(hm, axis=0, keepdims=True)                 # (1, H_pad)
    ss = jnp.sum(hm * hm, axis=0, keepdims=True)           # (1, H_pad)
    stats_ref[...] = jnp.concatenate([s, ss], axis=0)[None, :, :]

    # bf16 intermediate: halves the write-once/read-once HBM traffic of h.
    h_ref[...] = h.astype(h_ref.dtype)


def _conv1_stats_call(x, w1, b1, tile_n, n_true):
    n_pad, k_pad = x.shape
    h_pad = w1.shape[1]
    num_tiles = n_pad // tile_n
    kernel = functools.partial(_conv1_stats_kernel, tile_n=tile_n, n_true=n_true)
    return pl.pallas_call(
        kernel,
        out_shape=(jax.ShapeDtypeStruct((n_pad, h_pad), jnp.bfloat16),
                   jax.ShapeDtypeStruct((num_tiles, 2, h_pad), jnp.float32)),
        grid=(num_tiles,),
        in_specs=[
            pl.BlockSpec((tile_n, k_pad), lambda i: (i, 0)),      # patch tile
            pl.BlockSpec((k_pad, h_pad), lambda i: (0, 0)),       # resident weight
            pl.BlockSpec((1, h_pad), lambda i: (0, 0)),           # resident bias
        ],
        out_specs=(
            pl.BlockSpec((tile_n, h_pad), lambda i: (i, 0)),
            pl.BlockSpec((1, 2, h_pad), lambda i: (i, 0, 0)),
        ),
        compiler_params=_MOSAIC_PARAMS,
    )(x, w1, b1)


# ----------------------------------------------------------------------------
# Pass B: folded BatchNorm (scale/shift) + ReLU + 1x1 conv2 matmul + sigmoid
# ----------------------------------------------------------------------------
def _bn_conv2_kernel(h_ref, scale_ref, shift_ref, w2_ref, b2_ref, o_ref):
    # bf16 h * f32 scale promotes back to f32; BN applied in f32.
    a = jnp.maximum(h_ref[...] * scale_ref[...] + shift_ref[...], 0.0)
    z = jnp.dot(a.astype(jnp.bfloat16), w2_ref[...],
                preferred_element_type=jnp.float32)
    # Lane-dense bf16 output (padded lanes hold sigmoid(0)=0.5; the wrapper's
    # [:N, :num_slots] slice discards them).
    o_ref[...] = jax.nn.sigmoid(z + b2_ref[...]).astype(o_ref.dtype)


def _bn_conv2_call(h, scale, shift, w2, b2, tile_n):
    n_pad, h_pad = h.shape
    s_pad = w2.shape[1]
    num_tiles = n_pad // tile_n
    return pl.pallas_call(
        _bn_conv2_kernel,
        out_shape=jax.ShapeDtypeStruct((n_pad, s_pad), jnp.bfloat16),
        grid=(num_tiles,),
        in_specs=[
            pl.BlockSpec((tile_n, h_pad), lambda i: (i, 0)),
            pl.BlockSpec((1, h_pad), lambda i: (0, 0)),
            pl.BlockSpec((1, h_pad), lambda i: (0, 0)),
            pl.BlockSpec((h_pad, s_pad), lambda i: (0, 0)),
            pl.BlockSpec((1, s_pad), lambda i: (0, 0)),
        ],
        out_specs=pl.BlockSpec((tile_n, s_pad), lambda i: (i, 0)),
        compiler_params=_MOSAIC_PARAMS,
    )(h, scale, shift, w2, b2)


# ----------------------------------------------------------------------------
# EncoderMLP: fc1 -> relu -> fc2 -> LayerNorm -> relu -> fc3
# ----------------------------------------------------------------------------
def _mlp_kernel(x_ref, w1_ref, b1_ref, w2_ref, b2_ref, g_ref, bln_ref,
                w3_ref, b3_ref, o_ref, *, hidden_dim):
    h = jnp.dot(x_ref[...], w1_ref[...],
                preferred_element_type=jnp.float32) + b1_ref[...]
    h = jnp.maximum(h, 0.0)
    h2 = jnp.dot(h.astype(jnp.bfloat16), w2_ref[...],
                 preferred_element_type=jnp.float32) + b2_ref[...]
    # LayerNorm over the real hidden channels.  The zero-padded channels are
    # exactly 0 (zero-padded weights/biases), so a single-pass sum / sum-of-
    # squares divided by the true hidden count gives the exact statistics.
    inv_n = 1.0 / hidden_dim
    mu = jnp.sum(h2, axis=-1, keepdims=True) * inv_n
    var = jnp.maximum(jnp.sum(h2 * h2, axis=-1, keepdims=True) * inv_n - mu * mu, 0.0)
    y = (h2 - mu) * jax.lax.rsqrt(var + 1e-5)
    y = jnp.maximum(y * g_ref[...] + bln_ref[...], 0.0)
    out = jnp.dot(y.astype(jnp.bfloat16), w3_ref[...],
                  preferred_element_type=jnp.float32) + b3_ref[...]
    o_ref[...] = out.astype(o_ref.dtype)


def _mlp_call(x, w1, b1, w2, b2, g, bln, w3, b3, tile_m, hidden_dim):
    m_pad, p_pad = x.shape
    h_pad = w1.shape[1]
    d_pad = w3.shape[1]
    num_tiles = m_pad // tile_m
    kernel = functools.partial(_mlp_kernel, hidden_dim=hidden_dim)
    return pl.pallas_call(
        kernel,
        out_shape=jax.ShapeDtypeStruct((m_pad, d_pad), jnp.bfloat16),
        grid=(num_tiles,),
        in_specs=[
            pl.BlockSpec((tile_m, p_pad), lambda i: (i, 0)),
            pl.BlockSpec((p_pad, h_pad), lambda i: (0, 0)),
            pl.BlockSpec((1, h_pad), lambda i: (0, 0)),
            pl.BlockSpec((h_pad, h_pad), lambda i: (0, 0)),
            pl.BlockSpec((1, h_pad), lambda i: (0, 0)),
            pl.BlockSpec((1, h_pad), lambda i: (0, 0)),
            pl.BlockSpec((1, h_pad), lambda i: (0, 0)),
            pl.BlockSpec((h_pad, d_pad), lambda i: (0, 0)),
            pl.BlockSpec((1, d_pad), lambda i: (0, 0)),
        ],
        out_specs=pl.BlockSpec((tile_m, d_pad), lambda i: (i, 0)),
        compiler_params=_MOSAIC_PARAMS,
    )(x, w1, b1, w2, b2, g, bln, w3, b3)


# ----------------------------------------------------------------------------
# Forward wrapper
# ----------------------------------------------------------------------------
@jax.jit
def encoder_cnn_small_forward(obs, params):
    """obs: NCHW float32, (B, C, H, W) with H, W divisible by 10."""
    B, C, H, W = obs.shape
    Hp, Wp = H // 10, W // 10
    hidden = params["cnn1_w"].shape[1]
    num_slots = params["cnn2_w"].shape[1]
    slot_dim = params["fc3_w"].shape[1]

    K = C * 100
    P = Hp * Wp
    K_pad = _round_up(K, 128)
    H_pad = _round_up(hidden, 128)
    S_pad = _round_up(num_slots, 128)
    D_pad = _round_up(slot_dim, 128)
    P_pad = _round_up(P, 128)

    # --- glue: im2col for conv1 (one XLA transpose), pre-pad + cast bf16 -----
    # TODO(synk): fold the patch extraction into pass A to avoid this
    # standalone HBM round trip of the bf16 patch matrix.
    N = B * Hp * Wp
    TILE_N, NT_N = _choose_tile(N, target=4096)       # >=2 tiles (v7x 2-TC), 16-aligned
    N_pad = TILE_N * NT_N

    patches = obs.reshape(B, C, Hp, 10, Wp, 10).transpose(0, 2, 4, 1, 3, 5)
    patches = patches.reshape(N, K)
    patches = jnp.pad(patches, ((0, N_pad - N), (0, K_pad - K))).astype(jnp.bfloat16)

    w1 = _pad2(params["cnn1_w"], K_pad, H_pad).astype(jnp.bfloat16)
    b1 = _pad2(params["cnn1_b"], 1, H_pad)
    w2 = _pad2(params["cnn2_w"], H_pad, S_pad).astype(jnp.bfloat16)
    b2 = _pad2(params["cnn2_b"], 1, S_pad)

    # --- pass A: conv1 matmul + BN partial statistics ------------------------
    h, stats_part = _conv1_stats_call(patches, w1, b1, TILE_N, N)
    stats = jnp.sum(stats_part, axis=0)                    # (2, H_pad), tiny
    mu = stats[0:1] / N
    var = jnp.maximum(stats[1:2] / N - mu * mu, 0.0)       # biased batch variance
    inv_std = jax.lax.rsqrt(var + 1e-5)
    bn_g = _pad2(params["bn_g"], 1, H_pad)
    bn_b = _pad2(params["bn_b"], 1, H_pad)
    scale = bn_g * inv_std                                 # folded BN scale/shift
    shift = bn_b - mu * scale

    # --- pass B: BN normalize + ReLU + 1x1 conv2 + sigmoid -------------------
    hb = _bn_conv2_call(h, scale, shift, w2, b2, TILE_N)   # (N_pad, S_pad) bf16

    # --- glue: (B, Hp, Wp, slots) -> (B*slots, Hp*Wp)  (tiny tensor) ---------
    conv_out = hb[:N, :num_slots].reshape(B, Hp, Wp, num_slots)
    conv_out = conv_out.transpose(0, 3, 1, 2).reshape(B * num_slots, P)

    # --- EncoderMLP -----------------------------------------------------------
    M = B * num_slots
    TILE_M, NT_M = _choose_tile(M, target=2048)
    M_pad = TILE_M * NT_M
    x_mlp = jnp.pad(conv_out, ((0, M_pad - M), (0, P_pad - P))).astype(jnp.bfloat16)

    fc1_w = _pad2(params["fc1_w"], P_pad, H_pad).astype(jnp.bfloat16)
    fc1_b = _pad2(params["fc1_b"], 1, H_pad)
    fc2_w = _pad2(params["fc2_w"], H_pad, H_pad).astype(jnp.bfloat16)
    fc2_b = _pad2(params["fc2_b"], 1, H_pad)
    ln_g = _pad2(params["ln_g"], 1, H_pad)
    ln_b = _pad2(params["ln_b"], 1, H_pad)
    fc3_w = _pad2(params["fc3_w"], H_pad, D_pad).astype(jnp.bfloat16)
    fc3_b = _pad2(params["fc3_b"], 1, D_pad)

    out = _mlp_call(x_mlp, fc1_w, fc1_b, fc2_w, fc2_b, ln_g, ln_b,
                    fc3_w, fc3_b, TILE_M, hidden)          # (M_pad, D_pad) bf16
    out = out[:M, :slot_dim].astype(jnp.float32)
    return out.reshape(B, num_slots, slot_dim)


# ----------------------------------------------------------------------------
# Pure-JAX f32 reference (matches the PyTorch forward) and parameter init
# ----------------------------------------------------------------------------
def _reference_forward(obs, params):
    B, C, H, W = obs.shape
    Hp, Wp = H // 10, W // 10
    num_slots = params["cnn2_w"].shape[1]
    slot_dim = params["fc3_w"].shape[1]
    x = obs.reshape(B, C, Hp, 10, Wp, 10).transpose(0, 2, 4, 1, 3, 5)
    x = x.reshape(B * Hp * Wp, C * 100)
    h = x @ params["cnn1_w"] + params["cnn1_b"]
    mu = h.mean(0, keepdims=True)
    var = ((h - mu) ** 2).mean(0, keepdims=True)
    h = (h - mu) / jnp.sqrt(var + 1e-5) * params["bn_g"] + params["bn_b"]
    h = jnp.maximum(h, 0.0)
    h = jax.nn.sigmoid(h @ params["cnn2_w"] + params["cnn2_b"])
    h = h.reshape(B, Hp, Wp, num_slots).transpose(0, 3, 1, 2)
    h = h.reshape(B * num_slots, Hp * Wp)
    y = jnp.maximum(h @ params["fc1_w"] + params["fc1_b"], 0.0)
    y = y @ params["fc2_w"] + params["fc2_b"]
    mu = y.mean(-1, keepdims=True)
    var = ((y - mu) ** 2).mean(-1, keepdims=True)
    y = (y - mu) / jnp.sqrt(var + 1e-5) * params["ln_g"] + params["ln_b"]
    y = jnp.maximum(y, 0.0)
    out = y @ params["fc3_w"] + params["fc3_b"]
    return out.reshape(B, num_slots, slot_dim)


def init_params(key, input_dim, hidden_dim, num_slots, slot_dim, wh_div10):
    """Deterministic synthetic parameters (same shapes as the PyTorch module)."""
    mlp_in = wh_div10[0] * wh_div10[1]
    keys = jax.random.split(key, 12)
    s = 0.1

    def nrm(k, shape):
        return (s * jax.random.normal(k, shape)).astype(jnp.float32)

    return {
        # cnn1: Conv2d(C, hidden, (10,10), stride=10) -> weight (C*100, hidden)
        "cnn1_w": nrm(keys[0], (input_dim * 100, hidden_dim)),
        "cnn1_b": nrm(keys[1], (1, hidden_dim)),
        # BatchNorm2d(hidden)
        "bn_g": jnp.ones((1, hidden_dim), jnp.float32),
        "bn_b": jnp.zeros((1, hidden_dim), jnp.float32),
        # cnn2: Conv2d(hidden, num_slots, (1,1))
        "cnn2_w": nrm(keys[2], (hidden_dim, num_slots)),
        "cnn2_b": nrm(keys[3], (1, num_slots)),
        # EncoderMLP
        "fc1_w": nrm(keys[4], (mlp_in, hidden_dim)),
        "fc1_b": nrm(keys[5], (1, hidden_dim)),
        "fc2_w": nrm(keys[6], (hidden_dim, hidden_dim)),
        "fc2_b": nrm(keys[7], (1, hidden_dim)),
        "ln_g": jnp.ones((1, hidden_dim), jnp.float32),
        "ln_b": jnp.zeros((1, hidden_dim), jnp.float32),
        "fc3_w": nrm(keys[8], (hidden_dim, slot_dim)),
        "fc3_b": nrm(keys[9], (1, slot_dim)),
    }


if __name__ == "__main__":
    # Small shapes consistent with the module:
    #   obs: (B=2, C=3, H=20, W=20); width_height//10 = (2,2) -> MLP input_dim=4
    B, C, H, W = 2, 3, 20, 20
    hidden_dim, num_slots, slot_dim = 32, 4, 8

    key = jax.random.PRNGKey(0)
    k_obs, k_par = jax.random.split(key)
    obs = jax.random.normal(k_obs, (B, C, H, W), dtype=jnp.float32)
    params = init_params(k_par, C, hidden_dim, num_slots, slot_dim,
                         (H // 10, W // 10))

    out = encoder_cnn_small_forward(obs, params)
    out = jax.block_until_ready(out)
    assert out.shape == (B, num_slots, slot_dim), out.shape

    ref = _reference_forward(obs, params)
    max_err = float(jnp.max(jnp.abs(out - ref)))
    assert jnp.allclose(out, ref, atol=1e-1, rtol=1e-1), max_err
    print("KERNEL_OK")
</pallas_src>

<mosaic_0001>
module attributes {stable_mosaic.version = 11 : i64} {
  func.func @_conv1_stats_kernel(%arg0: i32, %arg1: memref<16x384xbf16, #tpu.memory_space<vmem>>, %arg2: memref<384x128xbf16, #tpu.memory_space<vmem>>, %arg3: memref<1x128xf32, #tpu.memory_space<vmem>>, %arg4: memref<16x128xbf16, #tpu.memory_space<vmem>>, %arg5: memref<1x2x128xf32, #tpu.memory_space<vmem>>) attributes {dimension_semantics = [#tpu.dimension_semantics<parallel>], iteration_bounds = array<i64: 2>, scalar_prefetch = 0 : i64, scratch_operands = 0 : i64, tpu.core_type = #tpu.core_type<tc>, window_params = [{transform_indices = @transform_0, window_bounds = array<i64: 16, 384>}, {pipeline_mode = #tpu.pipeline_mode<synchronous>, transform_indices = @transform_1, window_bounds = array<i64: 384, 128>}, {pipeline_mode = #tpu.pipeline_mode<synchronous>, transform_indices = @transform_2, window_bounds = array<i64: 1, 128>}, {transform_indices = @transform_3, window_bounds = array<i64: 16, 128>}, {transform_indices = @transform_4, window_bounds = array<i64: 1, 2, 128>}]} {
    %c0 = arith.constant 0 : index
    %c0_0 = arith.constant 0 : index
    %0 = vector.load %arg1[%c0, %c0_0] : memref<16x384xbf16, #tpu.memory_space<vmem>>, vector<16x384xbf16>
    %c0_1 = arith.constant 0 : index
    %c0_2 = arith.constant 0 : index
    %1 = vector.load %arg2[%c0_1, %c0_2] : memref<384x128xbf16, #tpu.memory_space<vmem>>, vector<384x128xbf16>
    %cst = arith.constant dense<0.000000e+00> : vector<16x128xf32>
    %2 = tpu.matmul %0, %1, %cst {dimension_numbers = #tpu.dot_dimension_numbers<[1], [0], [0], [1], [0, 0, 1, 1], [], []>} : vector<16x384xbf16>, vector<384x128xbf16>, vector<16x128xf32> -> vector<16x128xf32>
    %c0_3 = arith.constant 0 : index
    %c0_4 = arith.constant 0 : index
    %3 = vector.load %arg3[%c0_3, %c0_4] : memref<1x128xf32, #tpu.memory_space<vmem>>, vector<1x128xf32>
    %4 = vector.broadcast %3 : vector<1x128xf32> to vector<16x128xf32>
    %5 = arith.addf %2, %4 : vector<16x128xf32>
    %c16_i32 = arith.constant 16 : i32
    %6 = arith.muli %arg0, %c16_i32 : i32
    %7 = tpu.iota {dimensions = array<i32: 0>} : vector<16x128xi32>
    %8 = vector.broadcast %6 : i32 to vector<16x128xi32>
    %9 = arith.addi %8, %7 : vector<16x128xi32>
    %c8_i32 = arith.constant 8 : i32
    %10 = vector.broadcast %c8_i32 : i32 to vector<16x128xi32>
    %11 = arith.cmpi slt, %9, %10 : vector<16x128xi32>
    %cst_5 = arith.constant 0.000000e+00 : f32
    %12 = vector.broadcast %cst_5 : f32 to vector<16x128xf32>
    %13 = arith.select %11, %5, %12 : vector<16x128xi1>, vector<16x128xf32>
    %cst_6 = arith.constant dense<0.000000e+00> : vector<128xf32>
    %14 = vector.multi_reduction <add>, %13, %cst_6 [0] : vector<16x128xf32> to vector<128xf32>
    %15 = vector.shape_cast %14 : vector<128xf32> to vector<1x128xf32>
    %16 = arith.mulf %13, %13 : vector<16x128xf32>
    %cst_7 = arith.constant dense<0.000000e+00> : vector<128xf32>
    %17 = vector.multi_reduction <add>, %16, %cst_7 [0] : vector<16x128xf32> to vector<128xf32>
    %18 = vector.shape_cast %17 : vector<128xf32> to vector<1x128xf32>
    %19 = tpu.concatenate %15, %18 in 0 : vector<1x128xf32>, vector<1x128xf32> -> vector<2x128xf32>
    %20 = vector.shape_cast %19 : vector<2x128xf32> to vector<1x2x128xf32>
    %c0_8 = arith.constant 0 : index
    %c0_9 = arith.constant 0 : index
    %c0_10 = arith.constant 0 : index
    %21 = vector.load %arg5[%c0_8, %c0_9, %c0_10] : memref<1x2x128xf32, #tpu.memory_space<vmem>>, vector<1x2x128xf32>
    tpu.vector_store %arg5[%c0_8, %c0_9, %c0_10], %20 {strides = array<i32>} : memref<1x2x128xf32, #tpu.memory_space<vmem>>, vector<1x2x128xf32>,
    %22 = arith.truncf %5 : vector<16x128xf32> to vector<16x128xbf16>
    %c0_11 = arith.constant 0 : index
    %c0_12 = arith.constant 0 : index
    %23 = vector.load %arg4[%c0_11, %c0_12] : memref<16x128xbf16, #tpu.memory_space<vmem>>, vector<16x128xbf16>
    tpu.vector_store %arg4[%c0_11, %c0_12], %22 {strides = array<i32>} : memref<16x128xbf16, #tpu.memory_space<vmem>>, vector<16x128xbf16>,
    return
  }
  func.func @transform_0(%arg0: i32) -> (i32, i32) {
    %c0_i32 = arith.constant 0 : i32
    %c0_i32_0 = arith.constant 0 : i32
    return %arg0, %c0_i32 : i32, i32
  }
  func.func @transform_1(%arg0: i32) -> (i32, i32) {
    %c0_i32 = arith.constant 0 : i32
    %c0_i32_0 = arith.constant 0 : i32
    %c0_i32_1 = arith.constant 0 : i32
    return %c0_i32, %c0_i32_0 : i32, i32
  }
  func.func @transform_2(%arg0: i32) -> (i32, i32) {
    %c0_i32 = arith.constant 0 : i32
    %c0_i32_0 = arith.constant 0 : i32
    %c0_i32_1 = arith.constant 0 : i32
    return %c0_i32, %c0_i32_0 : i32, i32
  }
  func.func @transform_3(%arg0: i32) -> (i32, i32) {
    %c0_i32 = arith.constant 0 : i32
    %c0_i32_0 = arith.constant 0 : i32
    return %arg0, %c0_i32 : i32, i32
  }
  func.func @transform_4(%arg0: i32) -> (i32, i32, i32) {
    %c0_i32 = arith.constant 0 : i32
    %c0_i32_0 = arith.constant 0 : i32
    %c0_i32_1 = arith.constant 0 : i32
    return %arg0, %c0_i32, %c0_i32_0 : i32, i32, i32
  }
}

module attributes {stable_mosaic.version = 11 : i64} {
  func.func @_bn_conv2_kernel(%arg0: i32, %arg1: memref<16x128xbf16, #tpu.memory_space<vmem>>, %arg2: memref<1x128xf32, #tpu.memory_space<vmem>>, %arg3: memref<1x128xf32, #tpu.memory_space<vmem>>, %arg4: memref<128x128xbf16, #tpu.memory_space<vmem>>, %arg5: memref<1x128xf32, #tpu.memory_space<vmem>>, %arg6: memref<16x128xbf16, #tpu.memory_space<vmem>>) attributes {dimension_semantics = [#tpu.dimension_semantics<parallel>], iteration_bounds = array<i64: 2>, scalar_prefetch = 0 : i64, scratch_operands = 0 : i64, tpu.core_type = #tpu.core_type<tc>, window_params = [{transform_indices = @transform_0, window_bounds = array<i64: 16, 128>}, {pipeline_mode = #tpu.pipeline_mode<synchronous>, transform_indices = @transform_1, window_bounds = array<i64: 1, 128>}, {pipeline_mode = #tpu.pipeline_mode<synchronous>, transform_indices = @transform_2, window_bounds = array<i64: 1, 128>}, {pipeline_mode = #tpu.pipeline_mode<synchronous>, transform_indices = @transform_3, window_bounds = array<i64: 128, 128>}, {pipeline_mode = #tpu.pipeline_mode<synchronous>, transform_indices = @transform_4, window_bounds = array<i64: 1, 128>}, {transform_indices = @transform_5, window_bounds = array<i64: 16, 128>}]} {
    %c0 = arith.constant 0 : index
    %c0_0 = arith.constant 0 : index
    %0 = vector.load %arg1[%c0, %c0_0] : memref<16x128xbf16, #tpu.memory_space<vmem>>, vector<16x128xbf16>
    %c0_1 = arith.constant 0 : index
    %c0_2 = arith.constant 0 : index
    %1 = vector.load %arg2[%c0_1, %c0_2] : memref<1x128xf32, #tpu.memory_space<vmem>>, vector<1x128xf32>
    %2 = arith.extf %0 : vector<16x128xbf16> to vector<16x128xf32>
    %3 = vector.broadcast %1 : vector<1x128xf32> to vector<16x128xf32>
    %4 = arith.mulf %2, %3 : vector<16x128xf32>
    %c0_3 = arith.constant 0 : index
    %c0_4 = arith.constant 0 : index
    %5 = vector.load %arg3[%c0_3, %c0_4] : memref<1x128xf32, #tpu.memory_space<vmem>>, vector<1x128xf32>
    %6 = vector.broadcast %5 : vector<1x128xf32> to vector<16x128xf32>
    %7 = arith.addf %4, %6 : vector<16x128xf32>
    %cst = arith.constant 0.000000e+00 : f32
    %8 = vector.broadcast %cst : f32 to vector<16x128xf32>
    %9 = arith.maximumf %7, %8 : vector<16x128xf32>
    %10 = arith.truncf %9 : vector<16x128xf32> to vector<16x128xbf16>
    %c0_5 = arith.constant 0 : index
    %c0_6 = arith.constant 0 : index
    %11 = vector.load %arg4[%c0_5, %c0_6] : memref<128x128xbf16, #tpu.memory_space<vmem>>, vector<128x128xbf16>
    %cst_7 = arith.constant dense<0.000000e+00> : vector<16x128xf32>
    %12 = tpu.matmul %10, %11, %cst_7 {dimension_numbers = #tpu.dot_dimension_numbers<[1], [0], [0], [1], [0, 0, 1, 1], [], []>} : vector<16x128xbf16>, vector<128x128xbf16>, vector<16x128xf32> -> vector<16x128xf32>
    %c0_8 = arith.constant 0 : index
    %c0_9 = arith.constant 0 : index
    %13 = vector.load %arg5[%c0_8, %c0_9] : memref<1x128xf32, #tpu.memory_space<vmem>>, vector<1x128xf32>
    %14 = vector.broadcast %13 : vector<1x128xf32> to vector<16x128xf32>
    %15 = arith.addf %12, %14 : vector<16x128xf32>
    %16 = arith.negf %15 : vector<16x128xf32>
    %17 = math.exp %16 : vector<16x128xf32>
    %cst_10 = arith.constant 1.000000e+00 : f32
    %18 = vector.broadcast %cst_10 : f32 to vector<16x128xf32>
    %19 = arith.addf %18, %17 : vector<16x128xf32>
    %20 = arith.divf %18, %19 : vector<16x128xf32>
    %21 = arith.truncf %20 : vector<16x128xf32> to vector<16x128xbf16>
    %c0_11 = arith.constant 0 : index
    %c0_12 = arith.constant 0 : index
    %22 = vector.load %arg6[%c0_11, %c0_12] : memref<16x128xbf16, #tpu.memory_space<vmem>>, vector<16x128xbf16>
    tpu.vector_store %arg6[%c0_11, %c0_12], %21 {strides = array<i32>} : memref<16x128xbf16, #tpu.memory_space<vmem>>, vector<16x128xbf16>,
    return
  }
  func.func @transform_0(%arg0: i32) -> (i32, i32) {
    %c0_i32 = arith.constant 0 : i32
    %c0_i32_0 = arith.constant 0 : i32
    return %arg0, %c0_i32 : i32, i32
  }
  func.func @transform_1(%arg0: i32) -> (i32, i32) {
    %c0_i32 = arith.constant 0 : i32
    %c0_i32_0 = arith.constant 0 : i32
    %c0_i32_1 = arith.constant 0 : i32
    return %c0_i32, %c0_i32_0 : i32, i32
  }
  func.func @transform_2(%arg0: i32) -> (i32, i32) {
    %c0_i32 = arith.constant 0 : i32
    %c0_i32_0 = arith.constant 0 : i32
    %c0_i32_1 = arith.constant 0 : i32
    return %c0_i32, %c0_i32_0 : i32, i32
  }
  func.func @transform_3(%arg0: i32) -> (i32, i32) {
    %c0_i32 = arith.constant 0 : i32
    %c0_i32_0 = arith.constant 0 : i32
    %c0_i32_1 = arith.constant 0 : i32
    return %c0_i32, %c0_i32_0 : i32, i32
  }
  func.func @transform_4(%arg0: i32) -> (i32, i32) {
    %c0_i32 = arith.constant 0 : i32
    %c0_i32_0 = arith.constant 0 : i32
    %c0_i32_1 = arith.constant 0 : i32
    return %c0_i32, %c0_i32_0 : i32, i32
  }
  func.func @transform_5(%arg0: i32) -> (i32, i32) {
    %c0_i32 = arith.constant 0 : i32
    %c0_i32_0 = arith.constant 0 : i32
    return %arg0, %c0_i32 : i32, i32
  }
}

module attributes {stable_mosaic.version = 11 : i64} {
  func.func @_mlp_kernel(%arg0: i32, %arg1: memref<16x128xbf16, #tpu.memory_space<vmem>>, %arg2: memref<128x128xbf16, #tpu.memory_space<vmem>>, %arg3: memref<1x128xf32, #tpu.memory_space<vmem>>, %arg4: memref<128x128xbf16, #tpu.memory_space<vmem>>, %arg5: memref<1x128xf32, #tpu.memory_space<vmem>>, %arg6: memref<1x128xf32, #tpu.memory_space<vmem>>, %arg7: memref<1x128xf32, #tpu.memory_space<vmem>>, %arg8: memref<128x128xbf16, #tpu.memory_space<vmem>>, %arg9: memref<1x128xf32, #tpu.memory_space<vmem>>, %arg10: memref<16x128xbf16, #tpu.memory_space<vmem>>) attributes {dimension_semantics = [#tpu.dimension_semantics<parallel>], iteration_bounds = array<i64: 2>, scalar_prefetch = 0 : i64, scratch_operands = 0 : i64, tpu.core_type = #tpu.core_type<tc>, window_params = [{transform_indices = @transform_0, window_bounds = array<i64: 16, 128>}, {pipeline_mode = #tpu.pipeline_mode<synchronous>, transform_indices = @transform_1, window_bounds = array<i64: 128, 128>}, {pipeline_mode = #tpu.pipeline_mode<synchronous>, transform_indices = @transform_2, window_bounds = array<i64: 1, 128>}, {pipeline_mode = #tpu.pipeline_mode<synchronous>, transform_indices = @transform_3, window_bounds = array<i64: 128, 128>}, {pipeline_mode = #tpu.pipeline_mode<synchronous>, transform_indices = @transform_4, window_bounds = array<i64: 1, 128>}, {pipeline_mode = #tpu.pipeline_mode<synchronous>, transform_indices = @transform_5, window_bounds = array<i64: 1, 128>}, {pipeline_mode = #tpu.pipeline_mode<synchronous>, transform_indices = @transform_6, window_bounds = array<i64: 1, 128>}, {pipeline_mode = #tpu.pipeline_mode<synchronous>, transform_indices = @transform_7, window_bounds = array<i64: 128, 128>}, {pipeline_mode = #tpu.pipeline_mode<synchronous>, transform_indices = @transform_8, window_bounds = array<i64: 1, 128>}, {transform_indices = @transform_9, window_bounds = array<i64: 16, 128>}]} {
    %c0 = arith.constant 0 : index
    %c0_0 = arith.constant 0 : index
    %0 = vector.load %arg1[%c0, %c0_0] : memref<16x128xbf16, #tpu.memory_space<vmem>>, vector<16x128xbf16>
    %c0_1 = arith.constant 0 : index
    %c0_2 = arith.constant 0 : index
    %1 = vector.load %arg2[%c0_1, %c0_2] : memref<128x128xbf16, #tpu.memory_space<vmem>>, vector<128x128xbf16>
    %cst = arith.constant dense<0.000000e+00> : vector<16x128xf32>
    %2 = tpu.matmul %0, %1, %cst {dimension_numbers = #tpu.dot_dimension_numbers<[1], [0], [0], [1], [0, 0, 1, 1], [], []>} : vector<16x128xbf16>, vector<128x128xbf16>, vector<16x128xf32> -> vector<16x128xf32>
    %c0_3 = arith.constant 0 : index
    %c0_4 = arith.constant 0 : index
    %3 = vector.load %arg3[%c0_3, %c0_4] : memref<1x128xf32, #tpu.memory_space<vmem>>, vector<1x128xf32>
    %4 = vector.broadcast %3 : vector<1x128xf32> to vector<16x128xf32>
    %5 = arith.addf %2, %4 : vector<16x128xf32>
    %cst_5 = arith.constant 0.000000e+00 : f32
    %6 = vector.broadcast %cst_5 : f32 to vector<16x128xf32>
    %7 = arith.maximumf %5, %6 : vector<16x128xf32>
    %8 = arith.truncf %7 : vector<16x128xf32> to vector<16x128xbf16>
    %c0_6 = arith.constant 0 : index
    %c0_7 = arith.constant 0 : index
    %9 = vector.load %arg4[%c0_6, %c0_7] : memref<128x128xbf16, #tpu.memory_space<vmem>>, vector<128x128xbf16>
    %cst_8 = arith.constant dense<0.000000e+00> : vector<16x128xf32>
    %10 = tpu.matmul %8, %9, %cst_8 {dimension_numbers = #tpu.dot_dimension_numbers<[1], [0], [0], [1], [0, 0, 1, 1], [], []>} : vector<16x128xbf16>, vector<128x128xbf16>, vector<16x128xf32> -> vector<16x128xf32>
    %c0_9 = arith.constant 0 : index
    %c0_10 = arith.constant 0 : index
    %11 = vector.load %arg5[%c0_9, %c0_10] : memref<1x128xf32, #tpu.memory_space<vmem>>, vector<1x128xf32>
    %12 = vector.broadcast %11 : vector<1x128xf32> to vector<16x128xf32>
    %13 = arith.addf %10, %12 : vector<16x128xf32>
    %cst_11 = arith.constant dense<0.000000e+00> : vector<16xf32>
    %14 = vector.multi_reduction <add>, %13, %cst_11 [1] : vector<16x128xf32> to vector<16xf32>
    %15 = vector.shape_cast %14 : vector<16xf32> to vector<16x1xf32>
    %cst_12 = arith.constant 3.125000e-02 : f32
    %16 = vector.broadcast %cst_12 : f32 to vector<16x1xf32>
    %17 = arith.mulf %15, %16 : vector<16x1xf32>
    %18 = arith.mulf %13, %13 : vector<16x128xf32>
    %cst_13 = arith.constant dense<0.000000e+00> : vector<16xf32>
    %19 = vector.multi_reduction <add>, %18, %cst_13 [1] : vector<16x128xf32> to vector<16xf32>
    %20 = vector.shape_cast %19 : vector<16xf32> to vector<16x1xf32>
    %cst_14 = arith.constant 3.125000e-02 : f32
    %21 = vector.broadcast %cst_14 : f32 to vector<16x1xf32>
    %22 = arith.mulf %20, %21 : vector<16x1xf32>
    %23 = arith.mulf %17, %17 : vector<16x1xf32>
    %24 = arith.subf %22, %23 : vector<16x1xf32>
    %cst_15 = arith.constant 0.000000e+00 : f32
    %25 = vector.broadcast %cst_15 : f32 to vector<16x1xf32>
    %26 = arith.maximumf %24, %25 : vector<16x1xf32>
    %27 = vector.broadcast %17 : vector<16x1xf32> to vector<16x128xf32>
    %28 = arith.subf %13, %27 : vector<16x128xf32>
    %cst_16 = arith.constant 9.99999974E-6 : f32
    %29 = vector.broadcast %cst_16 : f32 to vector<16x1xf32>
    %30 = arith.addf %26, %29 : vector<16x1xf32>
    %31 = math.rsqrt %30 : vector<16x1xf32>
    %32 = vector.broadcast %31 : vector<16x1xf32> to vector<16x128xf32>
    %33 = arith.mulf %28, %32 : vector<16x128xf32>
    %c0_17 = arith.constant 0 : index
    %c0_18 = arith.constant 0 : index
    %34 = vector.load %arg6[%c0_17, %c0_18] : memref<1x128xf32, #tpu.memory_space<vmem>>, vector<1x128xf32>
    %35 = vector.broadcast %34 : vector<1x128xf32> to vector<16x128xf32>
    %36 = arith.mulf %33, %35 : vector<16x128xf32>
    %c0_19 = arith.constant 0 : index
    %c0_20 = arith.constant 0 : index
    %37 = vector.load %arg7[%c0_19, %c0_20] : memref<1x128xf32, #tpu.memory_space<vmem>>, vector<1x128xf32>
    %38 = vector.broadcast %37 : vector<1x128xf32> to vector<16x128xf32>
    %39 = arith.addf %36, %38 : vector<16x128xf32>
    %cst_21 = arith.constant 0.000000e+00 : f32
    %40 = vector.broadcast %cst_21 : f32 to vector<16x128xf32>
    %41 = arith.maximumf %39, %40 : vector<16x128xf32>
    %42 = arith.truncf %41 : vector<16x128xf32> to vector<16x128xbf16>
    %c0_22 = arith.constant 0 : index
    %c0_23 = arith.constant 0 : index
    %43 = vector.load %arg8[%c0_22, %c0_23] : memref<128x128xbf16, #tpu.memory_space<vmem>>, vector<128x128xbf16>
    %cst_24 = arith.constant dense<0.000000e+00> : vector<16x128xf32>
    %44 = tpu.matmul %42, %43, %cst_24 {dimension_numbers = #tpu.dot_dimension_numbers<[1], [0], [0], [1], [0, 0, 1, 1], [], []>} : vector<16x128xbf16>, vector<128x128xbf16>, vector<16x128xf32> -> vector<16x128xf32>
    %c0_25 = arith.constant 0 : index
    %c0_26 = arith.constant 0 : index
    %45 = vector.load %arg9[%c0_25, %c0_26] : memref<1x128xf32, #tpu.memory_space<vmem>>, vector<1x128xf32>
    %46 = vector.broadcast %45 : vector<1x128xf32> to vector<16x128xf32>
    %47 = arith.addf %44, %46 : vector<16x128xf32>
    %48 = arith.truncf %47 : vector<16x128xf32> to vector<16x128xbf16>
    %c0_27 = arith.constant 0 : index
    %c0_28 = arith.constant 0 : index
    %49 = vector.load %arg10[%c0_27, %c0_28] : memref<16x128xbf16, #tpu.memory_space<vmem>>, vector<16x128xbf16>
    tpu.vector_store %arg10[%c0_27, %c0_28], %48 {strides = array<i32>} : memref<16x128xbf16, #tpu.memory_space<vmem>>, vector<16x128xbf16>,
    return
  }
  func.func @transform_0(%arg0: i32) -> (i32, i32) {
    %c0_i32 = arith.constant 0 : i32
    %c0_i32_0 = arith.constant 0 : i32
    return %arg0, %c0_i32 : i32, i32
  }
  func.func @transform_1(%arg0: i32) -> (i32, i32) {
    %c0_i32 = arith.constant 0 : i32
    %c0_i32_0 = arith.constant 0 : i32
    %c0_i32_1 = arith.constant 0 : i32
    return %c0_i32, %c0_i32_0 : i32, i32
  }
  func.func @transform_2(%arg0: i32) -> (i32, i32) {
    %c0_i32 = arith.constant 0 : i32
    %c0_i32_0 = arith.constant 0 : i32
    %c0_i32_1 = arith.constant 0 : i32
    return %c0_i32, %c0_i32_0 : i32, i32
  }
  func.func @transform_3(%arg0: i32) -> (i32, i32) {
    %c0_i32 = arith.constant 0 : i32
    %c0_i32_0 = arith.constant 0 : i32
    %c0_i32_1 = arith.constant 0 : i32
    return %c0_i32, %c0_i32_0 : i32, i32
  }
  func.func @transform_4(%arg0: i32) -> (i32, i32) {
    %c0_i32 = arith.constant 0 : i32
    %c0_i32_0 = arith.constant 0 : i32
    %c0_i32_1 = arith.constant 0 : i32
    return %c0_i32, %c0_i32_0 : i32, i32
  }
  func.func @transform_5(%arg0: i32) -> (i32, i32) {
    %c0_i32 = arith.constant 0 : i32
    %c0_i32_0 = arith.constant 0 : i32
    %c0_i32_1 = arith.constant 0 : i32
    return %c0_i32, %c0_i32_0 : i32, i32
  }
  func.func @transform_6(%arg0: i32) -> (i32, i32) {
    %c0_i32 = arith.constant 0 : i32
    %c0_i32_0 = arith.constant 0 : i32
    %c0_i32_1 = arith.constant 0 : i32
    return %c0_i32, %c0_i32_0 : i32, i32
  }
  func.func @transform_7(%arg0: i32) -> (i32, i32) {
    %c0_i32 = arith.constant 0 : i32
    %c0_i32_0 = arith.constant 0 : i32
    %c0_i32_1 = arith.constant 0 : i32
    return %c0_i32, %c0_i32_0 : i32, i32
  }
  func.func @transform_8(%arg0: i32) -> (i32, i32) {
    %c0_i32 = arith.constant 0 : i32
    %c0_i32_0 = arith.constant 0 : i32
    %c0_i32_1 = arith.constant 0 : i32
    return %c0_i32, %c0_i32_0 : i32, i32
  }
  func.func @transform_9(%arg0: i32) -> (i32, i32) {
    %c0_i32 = arith.constant 0 : i32
    %c0_i32_0 = arith.constant 0 : i32
    return %arg0, %c0_i32 : i32, i32
  }
}

</mosaic_0001>

<llo_original>
// kernel: encoder_cnn_small_forward.4
$region0: #{encoder_cnn_small_forward.4}
  #allocation0 [shape = 'u32[]', space=smem, size = 0x4, offset = 0x4, fixed_abs, tag = 'smem constant byte address 0x4 - core index']
  #allocation1 [shape = 'u32[72,128]{1,0:T(1,128)}', space=vmem, size = 0x9000, scoped, tag = 'internal scratch']
  %s0 = inlined_call_operand.vmem [shape: bf16[32,128], index: 0, kind: input, shape index: {}]
  %s1 = inlined_call_operand.vmem [shape: f32[1,128], index: 1, kind: input, shape index: {}]
  %s2 = inlined_call_operand.vmem [shape: f32[1,128], index: 2, kind: input, shape index: {}]
  %s3 = inlined_call_operand.vmem [shape: bf16[128,128], index: 3, kind: input, shape index: {}]
  %s4 = inlined_call_operand.vmem [shape: f32[1,128], index: 4, kind: input, shape index: {}]
  %s5 = inlined_call_operand.vmem [shape: bf16[32,128], index: 5, kind: output, shape index: {}]
  %s6 = sld [smem:[#allocation0]]
  $region53: #{encoder_cnn_small_forward.4} parent=0
    _
  %s8 = ssub.s32 1, %s6
  %s9 = scalar_select 0, %s8, %s6
  loop: start=0, step=1, limit=4
  $region2: #{encoder_cnn_small_forward.4} parent=0 // loop_pre_header
    _
  $region3: #{encoder_cnn_small_forward.4} parent=0 // loop_header
    %s11 = sphi 0, %s15
    %p12 = scmp.ge.s32.totalorder %s11, 4
    %s21 = sphi 0, %s23
    %s24 = sphi 0, %s21
    %s25 = sphi 0, %s24
    %s41 = sphi 0, %s25
    %s45 = sphi 0, %s45
    %s47 = sphi 0, %s45
    %s48 = sphi 0, %s47
    %s62 = sphi 0, %s48
    %s66 = sphi 0, %s66
    %s68 = sphi 0, %s66
    %s69 = sphi 0, %s68
    %s83 = sphi 0, %s69
    %s87 = sphi 0, %s87
    %s89 = sphi 0, %s87
    %s90 = sphi 0, %s89
    %s104 = sphi 0, %s90
    %s108 = sphi 0, %s108
    %s110 = sphi 0, %s108
    %s111 = sphi 0, %s110
    %s125 = sphi 0, %s111
    %s131 = sphi 0, %s133
    %s134 = sphi 0, %s131
    %s135 = sphi 0, %s134
    %s151 = sphi 0, %s135
  $region4: #{encoder_cnn_small_forward.4} parent=0 // loop_header_branch
    %14 = sbr.rel (%p12) target = $region8
  $region5: #{encoder_cnn_small_forward.4} parent=0 // loop_body
    %s16 = ssub.s32 %s11, 1
    %s17 = ssub.s32 %s11, 2
    %s18 = sadd.s32 %s11, 1
    %s19 = ssub.s32 %s11, %s18
    %p20 = scmp.eq.s32.totalorder %s19, 0
    %s22 = sadd.s32 %s21, 1
    %s23 = scalar_select %p20, %s21, %s22
    %p26 = pneg %p20
    %p27 = scmp.eq.s32.totalorder %s11, 1
    %p28 = por %p26, %p27
    %p29 = scmp.ne.s32.totalorder %s21, %s24
    %p30 = scmp.eq.s32.totalorder %s11, 0
    %p31 = por %p29, %p30
    %p32 = scmp.ne.s32.totalorder %s21, %s24
    %p33 = scmp.eq.s32.totalorder %s16, 1
    %p34 = por %p32, %p33
    %p35 = scmp.ne.s32.totalorder %s24, %s25
    %p36 = scmp.eq.s32.totalorder %s16, 0
    %p37 = por %p35, %p36
    %p38 = scmp.ne.s32.totalorder %s24, %s25
    %p39 = scmp.eq.s32.totalorder %s17, 1
    %p40 = por %p38, %p39
    %p42 = scmp.ne.s32.totalorder %s25, %s41
    %p43 = scmp.eq.s32.totalorder %s17, 0
    %p44 = por %p42, %p43
    %s46 = sadd.s32 %s45, 1
    %p49 = scmp.eq.s32.totalorder %s11, 1
    %p50 = scmp.ne.s32.totalorder %s45, %s47
    %p51 = scmp.eq.s32.totalorder %s11, 0
    %p52 = por %p50, %p51
    %p53 = scmp.ne.s32.totalorder %s45, %s47
    %p54 = scmp.eq.s32.totalorder %s16, 1
    %p55 = por %p53, %p54
    %p56 = scmp.ne.s32.totalorder %s47, %s48
    %p57 = scmp.eq.s32.totalorder %s16, 0
    %p58 = por %p56, %p57
    %p59 = scmp.ne.s32.totalorder %s47, %s48
    %p60 = scmp.eq.s32.totalorder %s17, 1
    %p61 = por %p59, %p60
    %p63 = scmp.ne.s32.totalorder %s48, %s62
    %p64 = scmp.eq.s32.totalorder %s17, 0
    %p65 = por %p63, %p64
    %s67 = sadd.s32 %s66, 1
    %p70 = scmp.eq.s32.totalorder %s11, 1
    %p71 = scmp.ne.s32.totalorder %s66, %s68
    %p72 = scmp.eq.s32.totalorder %s11, 0
    %p73 = por %p71, %p72
    %p74 = scmp.ne.s32.totalorder %s66, %s68
    %p75 = scmp.eq.s32.totalorder %s16, 1
    %p76 = por %p74, %p75
    %p77 = scmp.ne.s32.totalorder %s68, %s69
    %p78 = scmp.eq.s32.totalorder %s16, 0
    %p79 = por %p77, %p78
    %p80 = scmp.ne.s32.totalorder %s68, %s69
    %p81 = scmp.eq.s32.totalorder %s17, 1
    %p82 = por %p80, %p81
    %p84 = scmp.ne.s32.totalorder %s69, %s83
    %p85 = scmp.eq.s32.totalorder %s17, 0
    %p86 = por %p84, %p85
    %s88 = sadd.s32 %s87, 1
    %p91 = scmp.eq.s32.totalorder %s11, 1
    %p92 = scmp.ne.s32.totalorder %s87, %s89
    %p93 = scmp.eq.s32.totalorder %s11, 0
    %p94 = por %p92, %p93
    %p95 = scmp.ne.s32.totalorder %s87, %s89
    %p96 = scmp.eq.s32.totalorder %s16, 1
    %p97 = por %p95, %p96
    %p98 = scmp.ne.s32.totalorder %s89, %s90
    %p99 = scmp.eq.s32.totalorder %s16, 0
    %p100 = por %p98, %p99
    %p101 = scmp.ne.s32.totalorder %s89, %s90
    %p102 = scmp.eq.s32.totalorder %s17, 1
    %p103 = por %p101, %p102
    %p105 = scmp.ne.s32.totalorder %s90, %s104
    %p106 = scmp.eq.s32.totalorder %s17, 0
    %p107 = por %p105, %p106
    %s109 = sadd.s32 %s108, 1
    %p112 = scmp.eq.s32.totalorder %s11, 1
    %p113 = scmp.ne.s32.totalorder %s108, %s110
    %p114 = scmp.eq.s32.totalorder %s11, 0
    %p115 = por %p113, %p114
    %p116 = scmp.ne.s32.totalorder %s108, %s110
    %p117 = scmp.eq.s32.totalorder %s16, 1
    %p118 = por %p116, %p117
    %p119 = scmp.ne.s32.totalorder %s110, %s111
    %p120 = scmp.eq.s32.totalorder %s16, 0
    %p121 = por %p119, %p120
    %p122 = scmp.ne.s32.totalorder %s110, %s111
    %p123 = scmp.eq.s32.totalorder %s17, 1
    %p124 = por %p122, %p123
    %p126 = scmp.ne.s32.totalorder %s111, %s125
    %p127 = scmp.eq.s32.totalorder %s17, 0
    %p128 = por %p126, %p127
    %s129 = ssub.s32 %s11, %s18
    %p130 = scmp.eq.s32.totalorder %s129, 0
    %s132 = sadd.s32 %s131, 1
    %s133 = scalar_select %p130, %s131, %s132
    %p136 = pneg %p130
    %p137 = scmp.eq.s32.totalorder %s11, 1
    %p138 = por %p136, %p137
    %p139 = scmp.ne.s32.totalorder %s131, %s134
    %p140 = scmp.eq.s32.totalorder %s11, 0
    %p141 = por %p139, %p140
    %p142 = scmp.ne.s32.totalorder %s131, %s134
    %p143 = scmp.eq.s32.totalorder %s16, 1
    %p144 = por %p142, %p143
    %p145 = scmp.ne.s32.totalorder %s134, %s135
    %p146 = scmp.eq.s32.totalorder %s16, 0
    %p147 = por %p145, %p146
    %p148 = scmp.ne.s32.totalorder %s134, %s135
    %p149 = scmp.eq.s32.totalorder %s17, 1
    %p150 = por %p148, %p149
    %p152 = scmp.ne.s32.totalorder %s135, %s151
    %p153 = scmp.eq.s32.totalorder %s17, 0
    %p154 = por %p152, %p153
    %p155 = scmp.le.s32.totalorder 1, %s11
    %p156 = scmp.lt.s32.totalorder %s11, 3
    %p157 = pnand %p155, %p156
    %p158 = pneg %p157
    // Predicated region
    $region9: #{encoder_cnn_small_forward.4} parent=5 // pred_check
      _
    $region10: #{encoder_cnn_small_forward.4} parent=5 // pred_check_branch
      %160 = sbr.rel (%p157) target = $region12
    $region11: #{encoder_cnn_small_forward.4} parent=5 // pred_region
      %s161 = ssub.s32 %s11, 1
      // Predicated region
      $region13: #{encoder_cnn_small_forward.4} parent=11 // pred_check
        %p162 = pneg %p58
      $region14: #{encoder_cnn_small_forward.4} parent=11 // pred_check_branch
        %164 = sbr.rel (%p162) target = $region16
      $region15: #{encoder_cnn_small_forward.4} parent=11 // pred_region
        _
      $region16: #{encoder_cnn_small_forward.4} parent=11 // pred_fallthru
        _
      // Predicated region
      $region17: #{encoder_cnn_small_forward.4} parent=11 // pred_check
        %p165 = pneg %p79
      $region18: #{encoder_cnn_small_forward.4} parent=11 // pred_check_branch
        %167 = sbr.rel (%p165) target = $region20
      $region19: #{encoder_cnn_small_forward.4} parent=11 // pred_region
        _
      $region20: #{encoder_cnn_small_forward.4} parent=11 // pred_fallthru
        _
      // Predicated region
      $region21: #{encoder_cnn_small_forward.4} parent=11 // pred_check
        %p168 = pneg %p100
      $region22: #{encoder_cnn_small_forward.4} parent=11 // pred_check_branch
        %170 = sbr.rel (%p168) target = $region24
      $region23: #{encoder_cnn_small_forward.4} parent=11 // pred_region
        _
      $region24: #{encoder_cnn_small_forward.4} parent=11 // pred_fallthru
        _
      // Predicated region
      $region25: #{encoder_cnn_small_forward.4} parent=11 // pred_check
        %p171 = pneg %p121
      $region26: #{encoder_cnn_small_forward.4} parent=11 // pred_check_branch
        %173 = sbr.rel (%p171) target = $region28
      $region27: #{encoder_cnn_small_forward.4} parent=11 // pred_region
        _
      $region28: #{encoder_cnn_small_forward.4} parent=11 // pred_fallthru
        _
    $region12: #{encoder_cnn_small_forward.4} parent=5 // pred_fallthru
      _
    %p174 = scmp.lt.s32.totalorder %s11, 2
    // Predicated region
    $region29: #{encoder_cnn_small_forward.4} parent=5 // pred_check
      %p175 = pneg %p174
    $region30: #{encoder_cnn_small_forward.4} parent=5 // pred_check_branch
      %177 = sbr.rel (%p175) target = $region32
    $region31: #{encoder_cnn_small_forward.4} parent=5 // pred_region
      // Predicated region
      $region33: #{encoder_cnn_small_forward.4} parent=31 // pred_check
        %p178 = pneg %p31
      $region34: #{encoder_cnn_small_forward.4} parent=31 // pred_check_branch
        %180 = sbr.rel (%p178) target = $region36
      $region35: #{encoder_cnn_small_forward.4} parent=31 // pred_region
        %s181 = smul.u32 2, %s11
        %p182 = scmp.lt.s32.totalorder %s181, 3
        %s183 = scalar_select %p182, %s181, 3
        %s184 = smul.addr %s183, 4
        %s185 = scalar_lea.vmem %s0, %s184
        %s186 = smul.u32 2, %s11
      $region36: #{encoder_cnn_small_forward.4} parent=31 // pred_fallthru
        _
    $region32: #{encoder_cnn_small_forward.4} parent=5 // pred_fallthru
      _
    %p187 = scmp.le.s32.totalorder 1, %s11
    %p188 = scmp.lt.s32.totalorder %s11, 3
    %p189 = pnand %p187, %p188
    %p190 = pneg %p189
    // Predicated region
    $region37: #{encoder_cnn_small_forward.4} parent=5 // pred_check
      _
    $region38: #{encoder_cnn_small_forward.4} parent=5 // pred_check_branch
      %192 = sbr.rel (%p189) target = $region40
    $region39: #{encoder_cnn_small_forward.4} parent=5 // pred_region
      %s193 = ssub.s32 %s11, 1
      %s194 = smul.u32 2, %s16
      %p195 = scmp.lt.s32.totalorder %s194, 3
      %s196 = scalar_select %p195, %s194, 3
      %s197 = smul.addr %s196, 4
      %s198 = scalar_lea.vmem %s0, %s197
      %p199 = pneg %p37
      %p200 = pneg %p34
      %p201 = pneg %p58
      %p202 = pneg %p55
      %p203 = pneg %p79
      %p204 = pneg %p76
      %p205 = pneg %p100
      %p206 = pneg %p97
      %p207 = pneg %p121
      %p208 = pneg %p118
      %p209 = pneg %p147
      %p210 = pneg %p144
      %s211 = smul.u32 2, %s16
      %p212 = scmp.lt.s32.totalorder %s211, 3
      %s213 = scalar_select %p212, %s211, 3
      %s214 = smul.addr %s213, 4
      %s215 = scalar_lea.vmem %s5, %s214
      %s216 = smul.u32 2, %s16
      %p217 = scmp.lt.s32.totalorder %s216, 3
      %s218 = scalar_select %p217, %s216, 3
      %s219 = smul.addr %s218, 4
      %s220 = scalar_lea.vmem %s0, %s219
      %s221 = smul.u32 2, %s16
      %s222 = smul.u32 2, %s16
      %p223 = scmp.lt.s32.totalorder %s222, 3
      %s224 = scalar_select %p223, %s222, 3
      %s225 = smul.addr %s224, 4
      %s226 = scalar_lea.vmem %s5, %s225
      %s227 = smul.u32 2, %s16
      %v228 = vld [vmem:[%s220] sm:$0xf]
      %v229 = vld [vmem:[%s220 + $0x4] sm:$0xf]
      %v230 = vld [vmem:[%s1] sm:$0x1]
      %v231 = vunpack.c.l.bf16 %v228
      %v232 = vunpack.c.l.bf16 %v229
      %v234 = vperm.slane %v230, 0
      %v236 = vmul.f32 %v231, %v234
      %v237 = vmul.f32 %v232, %v234
      %v238 = vld [vmem:[%s2] sm:$0x1]
      %v240 = vperm.slane %v238, 0
      %v242 = vadd.f32 %v236, %v240
      %v243 = vadd.f32 %v237, %v240
      %v244 = vmax.f32 %v242, 0.0
      %v245 = vmax.f32 %v243, 0.0
      %v246 = vpack.c.bf16 %v245, %v244
      %v247 = vld [vmem:[%s3] sm:$0xf]
      %v248 = vld [vmem:[%s3 + $0x4] sm:$0xf]
      %v249 = vld [vmem:[%s3 + $0x8] sm:$0xf]
      %v250 = vld [vmem:[%s3 + $0xc] sm:$0xf]
      %v251 = vld [vmem:[%s3 + $0x10] sm:$0xf]
      %v252 = vld [vmem:[%s3 + $0x14] sm:$0xf]
      %v253 = vld [vmem:[%s3 + $0x18] sm:$0xf]
      %v254 = vld [vmem:[%s3 + $0x1c] sm:$0xf]
      %v255 = vld [vmem:[%s3 + $0x20] sm:$0xf]
      %v256 = vld [vmem:[%s3 + $0x24] sm:$0xf]
      %v257 = vld [vmem:[%s3 + $0x28] sm:$0xf]
      %v258 = vld [vmem:[%s3 + $0x2c] sm:$0xf]
      %v259 = vld [vmem:[%s3 + $0x30] sm:$0xf]
      %v260 = vld [vmem:[%s3 + $0x34] sm:$0xf]
      %v261 = vld [vmem:[%s3 + $0x38] sm:$0xf]
      %v262 = vld [vmem:[%s3 + $0x3c] sm:$0xf]
      %v263 = vld [vmem:[%s4] sm:$0x1]
      %v265 = vperm.slane %v263, 0
      %v283 = vunpack.c.l.b16 %v247
      %v284 = vunpack.c.l.b16 %v248
      %v285 = vunpack.c.l.b16 %v249
      %v286 = vunpack.c.l.b16 %v250
      %v287 = vunpack.c.l.b16 %v251
      %v288 = vunpack.c.l.b16 %v252
      %v289 = vunpack.c.l.b16 %v253
      %v290 = vunpack.c.l.b16 %v254
      %v291 = vunpack.c.l.b16 %v255
      %v292 = vunpack.c.l.b16 %v256
      %v293 = vunpack.c.l.b16 %v257
      %v294 = vunpack.c.l.b16 %v258
      %v295 = vunpack.c.l.b16 %v259
      %v296 = vunpack.c.l.b16 %v260
      %v297 = vunpack.c.l.b16 %v261
      %v298 = vunpack.c.l.b16 %v262
      %v299 = vpack.c.b16 %v284, %v283
      %v300 = vpack.c.b16 %v286, %v285
      %v301 = vpack.c.b16 %v288, %v287
      %v302 = vpack.c.b16 %v290, %v289
      %v303 = vpack.c.b16 %v292, %v291
      %v304 = vpack.c.b16 %v294, %v293
      %v305 = vpack.c.b16 %v296, %v295
      %v306 = vpack.c.b16 %v298, %v297
      %315 = vmatpush.bf16.msra.mxu0 %v306
      %316 = vmatpush.bf16.msra.mxu0 %v305
      %317 = vmatpush.bf16.msra.mxu0 %v304
      %318 = vmatpush.bf16.msra.mxu0 %v303
      %319 = vmatpush.bf16.msra.mxu0 %v302
      %320 = vmatpush.bf16.msra.mxu0 %v301
      %321 = vmatpush.bf16.msra.mxu0 %v300
      %322 = vmatpush.bf16.msra.mxu0 %v299
      %323 = vmatmul.bf16.gmra.mxu0 %v246
      %v324 = vpop.f32.mrf.mxu0
      %v325 = vadd.f32 %v265, %v324
      %v326 = vpop.f32.mrf.mxu0
      %v327 = vadd.f32 %v265, %v326
      %328 = vdwg.mxu0
      %v329 = vxor.u32 %v325, 2147483648
      %v330 = vxor.u32 %v327, 2147483648
      %v331 = vmul.f32 %v329, 1.442695
      %v332 = vpow.pop %v331
      %v333 = vmul.f32 %v330, 1.442695
      %v334 = vpow.pop %v333
      %v335 = vadd.f32 %v332, 1.0
      %v336 = vadd.f32 %v334, 1.0
      %v337 = vrcp.pop %v335
      %v338 = vmul.f32 %v335, %v337
      %v339 = vsub.f32 1.0, %v338
      %v340 = vmul.f32 %v337, %v339
      %v341 = vadd.f32 %v337, %v340
      %vm342 = vweird.f32 %v335
      %vm343 = vweird.f32 %v337
      %vm344 = vmor %vm342, %vm343
      %v345 = vsel %vm344, %v337, %v341
      %v346 = vand.u32 2147483647, %v335
      %vm347 = vcmp.eq.f32.partialorder %v346, 8.507059e+37
      %v348 = vand.u32 %v335, 2147483648
      %v349 = vor.u32 1.1754944e-38, %v348
      %v350 = vsel %vm347, %v349, %v345
      %v351 = vmul.f32 1.0, %v350
      %v352 = vrcp.pop %v336
      %v353 = vmul.f32 %v336, %v352
      %v354 = vsub.f32 1.0, %v353
      %v355 = vmul.f32 %v352, %v354
      %v356 = vadd.f32 %v352, %v355
      %vm357 = vweird.f32 %v336
      %vm358 = vweird.f32 %v352
      %vm359 = vmor %vm357, %vm358
      %v360 = vsel %vm359, %v352, %v356
      %v361 = vand.u32 2147483647, %v336
      %vm362 = vcmp.eq.f32.partialorder %v361, 8.507059e+37
      %v363 = vand.u32 %v336, 2147483648
      %v364 = vor.u32 1.1754944e-38, %v363
      %v365 = vsel %vm362, %v364, %v360
      %v366 = vmul.f32 1.0, %v365
      %v367 = vpack.c.bf16 %v351, %v351
      %v368 = vpack.c.bf16 %v366, %v366
      %369 = vst [vmem:[%s226] sm:$0xf] %v367
      %370 = vst [vmem:[%s226 + $0x4] sm:$0xf] %v368
      %s371 = smul.u32 2, %s16
      %p372 = scmp.lt.s32.totalorder %s371, 3
      %s373 = scalar_select %p372, %s371, 3
      %s374 = smul.addr %s373, 4
      %s375 = scalar_lea.vmem %s5, %s374
      // Predicated region
      $region41: #{encoder_cnn_small_forward.4} parent=39 // pred_check
        %p376 = pneg %p144
      $region42: #{encoder_cnn_small_forward.4} parent=39 // pred_check_branch
        %378 = sbr.rel (%p376) target = $region44
      $region43: #{encoder_cnn_small_forward.4} parent=39 // pred_region
        %s379 = smul.u32 2, %s16
      $region44: #{encoder_cnn_small_forward.4} parent=39 // pred_fallthru
        _
    $region40: #{encoder_cnn_small_forward.4} parent=5 // pred_fallthru
      _
    %p380 = scmp.le.s32.totalorder 2, %s11
    // Predicated region
    $region45: #{encoder_cnn_small_forward.4} parent=5 // pred_check
      %p381 = pneg %p380
    $region46: #{encoder_cnn_small_forward.4} parent=5 // pred_check_branch
      %383 = sbr.rel (%p381) target = $region48
    $region47: #{encoder_cnn_small_forward.4} parent=5 // pred_region
      %s384 = ssub.s32 %s11, 2
      // Predicated region
      $region49: #{encoder_cnn_small_forward.4} parent=47 // pred_check
        %p385 = pneg %p150
      $region50: #{encoder_cnn_small_forward.4} parent=47 // pred_check_branch
        %387 = sbr.rel (%p385) target = $region52
      $region51: #{encoder_cnn_small_forward.4} parent=47 // pred_region
        %s388 = smul.u32 2, %s17
        %p389 = scmp.lt.s32.totalorder %s388, 3
        %s390 = scalar_select %p389, %s388, 3
        %s391 = smul.addr %s390, 4
        %s392 = scalar_lea.vmem %s5, %s391
      $region52: #{encoder_cnn_small_forward.4} parent=47 // pred_fallthru
        _
    $region48: #{encoder_cnn_small_forward.4} parent=5 // pred_fallthru
      _
  $region6: #{encoder_cnn_small_forward.4} parent=0 // loop_footer
    %s15 = sadd.s32 1, %s11
  $region7: #{encoder_cnn_small_forward.4} parent=0 // loop_footer_branch
    %10 = sbr.rel target = $region3
  $region8: #{encoder_cnn_small_forward.4} parent=0 // loop_exit
    _

// kernel: encoder_cnn_small_forward.3
$region0: #{encoder_cnn_small_forward.3}
  #allocation0 [shape = 'u32[]', space=smem, size = 0x4, offset = 0x4, fixed_abs, tag = 'smem constant byte address 0x4 - core index']
  #allocation1 [shape = 'u32[72,128]{1,0:T(1,128)}', space=vmem, size = 0x9000, scoped, tag = 'internal scratch']
  %s0 = inlined_call_operand.vmem [shape: bf16[32,384], index: 0, kind: input, shape index: {}]
  %s1 = inlined_call_operand.vmem [shape: bf16[384,128], index: 1, kind: input, shape index: {}]
  %s2 = inlined_call_operand.vmem [shape: f32[1,128], index: 2, kind: input, shape index: {}]
  %s3 = inlined_call_operand.vmem [shape: bf16[32,128], index: 3, kind: output, shape index: {0}]
  %s4 = inlined_call_operand.vmem [shape: f32[2,2,128], index: 4, kind: output, shape index: {1}]
  %5 = xla_tuple %s3, %s4
  %s6 = sld [smem:[#allocation0]]
  $region53: #{encoder_cnn_small_forward.3} parent=0
    _
  %s8 = ssub.s32 1, %s6
  %s9 = scalar_select 0, %s8, %s6
  loop: start=0, step=1, limit=4
  $region2: #{encoder_cnn_small_forward.3} parent=0 // loop_pre_header
    _
  $region3: #{encoder_cnn_small_forward.3} parent=0 // loop_header
    %s11 = sphi 0, %s15
    %p12 = scmp.ge.s32.totalorder %s11, 4
    %s21 = sphi 0, %s23
    %s24 = sphi 0, %s21
    %s25 = sphi 0, %s24
    %s41 = sphi 0, %s25
    %s45 = sphi 0, %s45
    %s47 = sphi 0, %s45
    %s48 = sphi 0, %s47
    %s62 = sphi 0, %s48
    %s66 = sphi 0, %s66
    %s68 = sphi 0, %s66
    %s69 = sphi 0, %s68
    %s83 = sphi 0, %s69
    %s89 = sphi 0, %s91
    %s92 = sphi 0, %s89
    %s93 = sphi 0, %s92
    %s109 = sphi 0, %s93
    %s115 = sphi 0, %s117
    %s118 = sphi 0, %s115
    %s119 = sphi 0, %s118
    %s135 = sphi 0, %s119
  $region4: #{encoder_cnn_small_forward.3} parent=0 // loop_header_branch
    %14 = sbr.rel (%p12) target = $region8
  $region5: #{encoder_cnn_small_forward.3} parent=0 // loop_body
    %s16 = ssub.s32 %s11, 1
    %s17 = ssub.s32 %s11, 2
    %s18 = sadd.s32 %s11, 1
    %s19 = ssub.s32 %s11, %s18
    %p20 = scmp.eq.s32.totalorder %s19, 0
    %s22 = sadd.s32 %s21, 1
    %s23 = scalar_select %p20, %s21, %s22
    %p26 = pneg %p20
    %p27 = scmp.eq.s32.totalorder %s11, 1
    %p28 = por %p26, %p27
    %p29 = scmp.ne.s32.totalorder %s21, %s24
    %p30 = scmp.eq.s32.totalorder %s11, 0
    %p31 = por %p29, %p30
    %p32 = scmp.ne.s32.totalorder %s21, %s24
    %p33 = scmp.eq.s32.totalorder %s16, 1
    %p34 = por %p32, %p33
    %p35 = scmp.ne.s32.totalorder %s24, %s25
    %p36 = scmp.eq.s32.totalorder %s16, 0
    %p37 = por %p35, %p36
    %p38 = scmp.ne.s32.totalorder %s24, %s25
    %p39 = scmp.eq.s32.totalorder %s17, 1
    %p40 = por %p38, %p39
    %p42 = scmp.ne.s32.totalorder %s25, %s41
    %p43 = scmp.eq.s32.totalorder %s17, 0
    %p44 = por %p42, %p43
    %s46 = sadd.s32 %s45, 1
    %p49 = scmp.eq.s32.totalorder %s11, 1
    %p50 = scmp.ne.s32.totalorder %s45, %s47
    %p51 = scmp.eq.s32.totalorder %s11, 0
    %p52 = por %p50, %p51
    %p53 = scmp.ne.s32.totalorder %s45, %s47
    %p54 = scmp.eq.s32.totalorder %s16, 1
    %p55 = por %p53, %p54
    %p56 = scmp.ne.s32.totalorder %s47, %s48
    %p57 = scmp.eq.s32.totalorder %s16, 0
    %p58 = por %p56, %p57
    %p59 = scmp.ne.s32.totalorder %s47, %s48
    %p60 = scmp.eq.s32.totalorder %s17, 1
    %p61 = por %p59, %p60
    %p63 = scmp.ne.s32.totalorder %s48, %s62
    %p64 = scmp.eq.s32.totalorder %s17, 0
    %p65 = por %p63, %p64
    %s67 = sadd.s32 %s66, 1
    %p70 = scmp.eq.s32.totalorder %s11, 1
    %p71 = scmp.ne.s32.totalorder %s66, %s68
    %p72 = scmp.eq.s32.totalorder %s11, 0
    %p73 = por %p71, %p72
    %p74 = scmp.ne.s32.totalorder %s66, %s68
    %p75 = scmp.eq.s32.totalorder %s16, 1
    %p76 = por %p74, %p75
    %p77 = scmp.ne.s32.totalorder %s68, %s69
    %p78 = scmp.eq.s32.totalorder %s16, 0
    %p79 = por %p77, %p78
    %p80 = scmp.ne.s32.totalorder %s68, %s69
    %p81 = scmp.eq.s32.totalorder %s17, 1
    %p82 = por %p80, %p81
    %p84 = scmp.ne.s32.totalorder %s69, %s83
    %p85 = scmp.eq.s32.totalorder %s17, 0
    %p86 = por %p84, %p85
    %s87 = ssub.s32 %s11, %s18
    %p88 = scmp.eq.s32.totalorder %s87, 0
    %s90 = sadd.s32 %s89, 1
    %s91 = scalar_select %p88, %s89, %s90
    %p94 = pneg %p88
    %p95 = scmp.eq.s32.totalorder %s11, 1
    %p96 = por %p94, %p95
    %p97 = scmp.ne.s32.totalorder %s89, %s92
    %p98 = scmp.eq.s32.totalorder %s11, 0
    %p99 = por %p97, %p98
    %p100 = scmp.ne.s32.totalorder %s89, %s92
    %p101 = scmp.eq.s32.totalorder %s16, 1
    %p102 = por %p100, %p101
    %p103 = scmp.ne.s32.totalorder %s92, %s93
    %p104 = scmp.eq.s32.totalorder %s16, 0
    %p105 = por %p103, %p104
    %p106 = scmp.ne.s32.totalorder %s92, %s93
    %p107 = scmp.eq.s32.totalorder %s17, 1
    %p108 = por %p106, %p107
    %p110 = scmp.ne.s32.totalorder %s93, %s109
    %p111 = scmp.eq.s32.totalorder %s17, 0
    %p112 = por %p110, %p111
    %s113 = ssub.s32 %s11, %s18
    %p114 = scmp.eq.s32.totalorder %s113, 0
    %s116 = sadd.s32 %s115, 1
    %s117 = scalar_select %p114, %s115, %s116
    %p120 = pneg %p114
    %p121 = scmp.eq.s32.totalorder %s11, 1
    %p122 = por %p120, %p121
    %p123 = scmp.ne.s32.totalorder %s115, %s118
    %p124 = scmp.eq.s32.totalorder %s11, 0
    %p125 = por %p123, %p124
    %p126 = scmp.ne.s32.totalorder %s115, %s118
    %p127 = scmp.eq.s32.totalorder %s16, 1
    %p128 = por %p126, %p127
    %p129 = scmp.ne.s32.totalorder %s118, %s119
    %p130 = scmp.eq.s32.totalorder %s16, 0
    %p131 = por %p129, %p130
    %p132 = scmp.ne.s32.totalorder %s118, %s119
    %p133 = scmp.eq.s32.totalorder %s17, 1
    %p134 = por %p132, %p133
    %p136 = scmp.ne.s32.totalorder %s119, %s135
    %p137 = scmp.eq.s32.totalorder %s17, 0
    %p138 = por %p136, %p137
    %p139 = scmp.le.s32.totalorder 1, %s11
    %p140 = scmp.lt.s32.totalorder %s11, 3
    %p141 = pnand %p139, %p140
    %p142 = pneg %p141
    // Predicated region
    $region9: #{encoder_cnn_small_forward.3} parent=5 // pred_check
      _
    $region10: #{encoder_cnn_small_forward.3} parent=5 // pred_check_branch
      %144 = sbr.rel (%p141) target = $region12
    $region11: #{encoder_cnn_small_forward.3} parent=5 // pred_region
      %s145 = ssub.s32 %s11, 1
      // Predicated region
      $region13: #{encoder_cnn_small_forward.3} parent=11 // pred_check
        %p146 = pneg %p58
      $region14: #{encoder_cnn_small_forward.3} parent=11 // pred_check_branch
        %148 = sbr.rel (%p146) target = $region16
      $region15: #{encoder_cnn_small_forward.3} parent=11 // pred_region
        _
      $region16: #{encoder_cnn_small_forward.3} parent=11 // pred_fallthru
        _
      // Predicated region
      $region17: #{encoder_cnn_small_forward.3} parent=11 // pred_check
        %p149 = pneg %p79
      $region18: #{encoder_cnn_small_forward.3} parent=11 // pred_check_branch
        %151 = sbr.rel (%p149) target = $region20
      $region19: #{encoder_cnn_small_forward.3} parent=11 // pred_region
        _
      $region20: #{encoder_cnn_small_forward.3} parent=11 // pred_fallthru
        _
    $region12: #{encoder_cnn_small_forward.3} parent=5 // pred_fallthru
      _
    %p152 = scmp.lt.s32.totalorder %s11, 2
    // Predicated region
    $region21: #{encoder_cnn_small_forward.3} parent=5 // pred_check
      %p153 = pneg %p152
    $region22: #{encoder_cnn_small_forward.3} parent=5 // pred_check_branch
      %155 = sbr.rel (%p153) target = $region24
    $region23: #{encoder_cnn_small_forward.3} parent=5 // pred_region
      // Predicated region
      $region25: #{encoder_cnn_small_forward.3} parent=23 // pred_check
        %p156 = pneg %p31
      $region26: #{encoder_cnn_small_forward.3} parent=23 // pred_check_branch
        %158 = sbr.rel (%p156) target = $region28
      $region27: #{encoder_cnn_small_forward.3} parent=23 // pred_region
        %s159 = smul.u32 2, %s11
        %p160 = scmp.lt.s32.totalorder %s159, 3
        %s161 = scalar_select %p160, %s159, 3
        %s162 = smul.addr %s161, 3
        %s163 = smul.addr %s162, 4
        %s164 = scalar_lea.vmem %s0, %s163
        %s165 = smul.u32 2, %s11
      $region28: #{encoder_cnn_small_forward.3} parent=23 // pred_fallthru
        _
    $region24: #{encoder_cnn_small_forward.3} parent=5 // pred_fallthru
      _
    %p166 = scmp.le.s32.totalorder 1, %s11
    %p167 = scmp.lt.s32.totalorder %s11, 3
    %p168 = pnand %p166, %p167
    %p169 = pneg %p168
    // Predicated region
    $region29: #{encoder_cnn_small_forward.3} parent=5 // pred_check
      _
    $region30: #{encoder_cnn_small_forward.3} parent=5 // pred_check_branch
      %171 = sbr.rel (%p168) target = $region32
    $region31: #{encoder_cnn_small_forward.3} parent=5 // pred_region
      %s172 = ssub.s32 %s11, 1
      %s173 = smul.u32 2, %s16
      %p174 = scmp.lt.s32.totalorder %s173, 3
      %s175 = scalar_select %p174, %s173, 3
      %s176 = smul.addr %s175, 3
      %s177 = smul.addr %s176, 4
      %s178 = scalar_lea.vmem %s0, %s177
      %p179 = pneg %p37
      %p180 = pneg %p34
      %p181 = pneg %p58
      %p182 = pneg %p55
      %p183 = pneg %p79
      %p184 = pneg %p76
      %p185 = pneg %p105
      %p186 = pneg %p102
      %s187 = smul.u32 2, %s16
      %p188 = scmp.lt.s32.totalorder %s187, 3
      %s189 = scalar_select %p188, %s187, 3
      %s190 = smul.addr %s189, 4
      %s191 = scalar_lea.vmem %s3, %s190
      %p192 = pneg %p131
      %p193 = pneg %p128
      %p194 = scmp.lt.s32.totalorder %s16, 1
      %s195 = scalar_select %p194, %s16, 1
      %s196 = smul.addr %s195, 2
      %s197 = scalar_lea.vmem %s4, %s196
      %s198 = smul.u32 2, %s16
      %p199 = scmp.lt.s32.totalorder %s198, 3
      %s200 = scalar_select %p199, %s198, 3
      %s201 = smul.addr %s200, 3
      %s202 = smul.addr %s201, 4
      %s203 = scalar_lea.vmem %s0, %s202
      %s204 = smul.u32 2, %s16
      %s205 = smul.u32 2, %s16
      %p206 = scmp.lt.s32.totalorder %s205, 3
      %s207 = scalar_select %p206, %s205, 3
      %s208 = smul.addr %s207, 4
      %s209 = scalar_lea.vmem %s3, %s208
      %s210 = smul.u32 2, %s16
      %p211 = scmp.lt.s32.totalorder %s16, 1
      %s212 = scalar_select %p211, %s16, 1
      %s213 = smul.addr %s212, 2
      %s214 = scalar_lea.vmem %s4, %s213
      %v215 = vld [vmem:[%s203] sm:$0xff]
      %v216 = vld [vmem:[%s203 + $0x8] sm:$0xf]
      %v217 = vld [vmem:[%s203 + $0xc] sm:$0xff]
      %v218 = vld [vmem:[%s203 + $0x14] sm:$0xf]
      %v219 = vld [vmem:[%s1] sm:$0xf]
      %v220 = vld [vmem:[%s1 + $0x4] sm:$0xf]
      %v221 = vld [vmem:[%s1 + $0x8] sm:$0xf]
      %v222 = vld [vmem:[%s1 + $0xc] sm:$0xf]
      %v223 = vld [vmem:[%s1 + $0x10] sm:$0xf]
      %v224 = vld [vmem:[%s1 + $0x14] sm:$0xf]
      %v225 = vld [vmem:[%s1 + $0x18] sm:$0xf]
      %v226 = vld [vmem:[%s1 + $0x1c] sm:$0xf]
      %v227 = vld [vmem:[%s1 + $0x20] sm:$0xf]
      %v228 = vld [vmem:[%s1 + $0x24] sm:$0xf]
      %v229 = vld [vmem:[%s1 + $0x28] sm:$0xf]
      %v230 = vld [vmem:[%s1 + $0x2c] sm:$0xf]
      %v231 = vld [vmem:[%s1 + $0x30] sm:$0xf]
      %v232 = vld [vmem:[%s1 + $0x34] sm:$0xf]
      %v233 = vld [vmem:[%s1 + $0x38] sm:$0xf]
      %v234 = vld [vmem:[%s1 + $0x3c] sm:$0xf]
      %v235 = vld [vmem:[%s1 + $0x40] sm:$0xf]
      %v236 = vld [vmem:[%s1 + $0x44] sm:$0xf]
      %v237 = vld [vmem:[%s1 + $0x48] sm:$0xf]
      %v238 = vld [vmem:[%s1 + $0x4c] sm:$0xf]
      %v239 = vld [vmem:[%s1 + $0x50] sm:$0xf]
      %v240 = vld [vmem:[%s1 + $0x54] sm:$0xf]
      %v241 = vld [vmem:[%s1 + $0x58] sm:$0xf]
      %v242 = vld [vmem:[%s1 + $0x5c] sm:$0xf]
      %v243 = vld [vmem:[%s1 + $0x60] sm:$0xf]
      %v244 = vld [vmem:[%s1 + $0x64] sm:$0xf]
      %v245 = vld [vmem:[%s1 + $0x68] sm:$0xf]
      %v246 = vld [vmem:[%s1 + $0x6c] sm:$0xf]
      %v247 = vld [vmem:[%s1 + $0x70] sm:$0xf]
      %v248 = vld [vmem:[%s1 + $0x74] sm:$0xf]
      %v249 = vld [vmem:[%s1 + $0x78] sm:$0xf]
      %v250 = vld [vmem:[%s1 + $0x7c] sm:$0xf]
      %v251 = vld [vmem:[%s1 + $0x80] sm:$0xf]
      %v252 = vld [vmem:[%s1 + $0x84] sm:$0xf]
      %v253 = vld [vmem:[%s1 + $0x88] sm:$0xf]
      %v254 = vld [vmem:[%s1 + $0x8c] sm:$0xf]
      %v255 = vld [vmem:[%s1 + $0x90] sm:$0xf]
      %v256 = vld [vmem:[%s1 + $0x94] sm:$0xf]
      %v257 = vld [vmem:[%s1 + $0x98] sm:$0xf]
      %v258 = vld [vmem:[%s1 + $0x9c] sm:$0xf]
      %v259 = vld [vmem:[%s1 + $0xa0] sm:$0xf]
      %v260 = vld [vmem:[%s1 + $0xa4] sm:$0xf]
      %v261 = vld [vmem:[%s1 + $0xa8] sm:$0xf]
      %v262 = vld [vmem:[%s1 + $0xac] sm:$0xf]
      %v263 = vld [vmem:[%s1 + $0xb0] sm:$0xf]
      %v264 = vld [vmem:[%s1 + $0xb4] sm:$0xf]
      %v265 = vld [vmem:[%s1 + $0xb8] sm:$0xf]
      %v266 = vld [vmem:[%s1 + $0xbc] sm:$0xf]
      %v267 = vld [vmem:[%s2] sm:$0x1]
      %v269 = vperm.slane %v267, 0
      %v275 = vunpack.c.l.b16 %v215
      %v276 = vunpack.c.h.b16 %v215
      %v277 = vunpack.c.l.b16 %v216
      %v278 = vunpack.c.l.b16 %v217
      %v279 = vunpack.c.h.b16 %v217
      %v280 = vunpack.c.l.b16 %v218
      %v281 = vpack.c.b16 %v278, %v275
      %v282 = vpack.c.b16 %v279, %v276
      %v283 = vpack.c.b16 %v280, %v277
      %v335 = vunpack.c.l.b16 %v219
      %v336 = vunpack.c.l.b16 %v220
      %v337 = vunpack.c.l.b16 %v221
      %v338 = vunpack.c.l.b16 %v222
      %v339 = vunpack.c.l.b16 %v223
      %v340 = vunpack.c.l.b16 %v224
      %v341 = vunpack.c.l.b16 %v225
      %v342 = vunpack.c.l.b16 %v226
      %v343 = vunpack.c.l.b16 %v227
      %v344 = vunpack.c.l.b16 %v228
      %v345 = vunpack.c.l.b16 %v229
      %v346 = vunpack.c.l.b16 %v230
      %v347 = vunpack.c.l.b16 %v231
      %v348 = vunpack.c.l.b16 %v232
      %v349 = vunpack.c.l.b16 %v233
      %v350 = vunpack.c.l.b16 %v234
      %v351 = vunpack.c.l.b16 %v235
      %v352 = vunpack.c.l.b16 %v236
      %v353 = vunpack.c.l.b16 %v237
      %v354 = vunpack.c.l.b16 %v238
      %v355 = vunpack.c.l.b16 %v239
      %v356 = vunpack.c.l.b16 %v240
      %v357 = vunpack.c.l.b16 %v241
      %v358 = vunpack.c.l.b16 %v242
      %v359 = vunpack.c.l.b16 %v243
      %v360 = vunpack.c.l.b16 %v244
      %v361 = vunpack.c.l.b16 %v245
      %v362 = vunpack.c.l.b16 %v246
      %v363 = vunpack.c.l.b16 %v247
      %v364 = vunpack.c.l.b16 %v248
      %v365 = vunpack.c.l.b16 %v249
      %v366 = vunpack.c.l.b16 %v250
      %v367 = vunpack.c.l.b16 %v251
      %v368 = vunpack.c.l.b16 %v252
      %v369 = vunpack.c.l.b16 %v253
      %v370 = vunpack.c.l.b16 %v254
      %v371 = vunpack.c.l.b16 %v255
      %v372 = vunpack.c.l.b16 %v256
      %v373 = vunpack.c.l.b16 %v257
      %v374 = vunpack.c.l.b16 %v258
      %v375 = vunpack.c.l.b16 %v259
      %v376 = vunpack.c.l.b16 %v260
      %v377 = vunpack.c.l.b16 %v261
      %v378 = vunpack.c.l.b16 %v262
      %v379 = vunpack.c.l.b16 %v263
      %v380 = vunpack.c.l.b16 %v264
      %v381 = vunpack.c.l.b16 %v265
      %v382 = vunpack.c.l.b16 %v266
      %v383 = vpack.c.b16 %v336, %v335
      %v384 = vpack.c.b16 %v338, %v337
      %v385 = vpack.c.b16 %v340, %v339
      %v386 = vpack.c.b16 %v342, %v341
      %v387 = vpack.c.b16 %v344, %v343
      %v388 = vpack.c.b16 %v346, %v345
      %v389 = vpack.c.b16 %v348, %v347
      %v390 = vpack.c.b16 %v350, %v349
      %v391 = vpack.c.b16 %v352, %v351
      %v392 = vpack.c.b16 %v354, %v353
      %v393 = vpack.c.b16 %v356, %v355
      %v394 = vpack.c.b16 %v358, %v357
      %v395 = vpack.c.b16 %v360, %v359
      %v396 = vpack.c.b16 %v362, %v361
      %v397 = vpack.c.b16 %v364, %v363
      %v398 = vpack.c.b16 %v366, %v365
      %v399 = vpack.c.b16 %v368, %v367
      %v400 = vpack.c.b16 %v370, %v369
      %v401 = vpack.c.b16 %v372, %v371
      %v402 = vpack.c.b16 %v374, %v373
      %v403 = vpack.c.b16 %v376, %v375
      %v404 = vpack.c.b16 %v378, %v377
      %v405 = vpack.c.b16 %v380, %v379
      %v406 = vpack.c.b16 %v382, %v381
      %431 = vmatpush.bf16.msra.mxu0 %v390
      %432 = vmatpush.bf16.msra.mxu0 %v389
      %433 = vmatpush.bf16.msra.mxu0 %v388
      %434 = vmatpush.bf16.msra.mxu0 %v387
      %435 = vmatpush.bf16.msra.mxu0 %v386
      %436 = vmatpush.bf16.msra.mxu0 %v385
      %437 = vmatpush.bf16.msra.mxu0 %v384
      %438 = vmatpush.bf16.msra.mxu0 %v383
      %439 = vmatmul.bf16.gmra.mxu0 %v281
      %v440 = vpop.f32.mrf.mxu0
      %v441 = vadd.f32 %v269, %v440
      %v442 = vpop.f32.mrf.mxu0
      %v443 = vadd.f32 %v269, %v442
      %444 = vdwg.mxu0
      %445 = vmatpush.bf16.msra.mxu0 %v398
      %446 = vmatpush.bf16.msra.mxu0 %v397
      %447 = vmatpush.bf16.msra.mxu0 %v396
      %448 = vmatpush.bf16.msra.mxu0 %v395
      %449 = vmatpush.bf16.msra.mxu0 %v394
      %450 = vmatpush.bf16.msra.mxu0 %v393
      %451 = vmatpush.bf16.msra.mxu0 %v392
      %452 = vmatpush.bf16.msra.mxu0 %v391
      %453 = vmatmul.bf16.gmra.mxu0 %v282
      %v454 = vpop.f32.mrf.mxu0
      %v455 = vadd.f32 %v441, %v454
      %v456 = vpop.f32.mrf.mxu0
      %v457 = vadd.f32 %v443, %v456
      %458 = vdwg.mxu0
      %459 = vmatpush.bf16.msra.mxu0 %v406
      %460 = vmatpush.bf16.msra.mxu0 %v405
      %461 = vmatpush.bf16.msra.mxu0 %v404
      %462 = vmatpush.bf16.msra.mxu0 %v403
      %463 = vmatpush.bf16.msra.mxu0 %v402
      %464 = vmatpush.bf16.msra.mxu0 %v401
      %465 = vmatpush.bf16.msra.mxu0 %v400
      %466 = vmatpush.bf16.msra.mxu0 %v399
      %467 = vmatmul.bf16.gmra.mxu0 %v283
      %v468 = vpop.f32.mrf.mxu0
      %v469 = vadd.f32 %v455, %v468
      %v470 = vpop.f32.mrf.mxu0
      %v471 = vadd.f32 %v457, %v470
      %472 = vdwg.mxu0
      %s473 = smul.u32 %s16, 16
      %v474 = vlaneseq
      %v475 = vshrl.u32 %v474, 7
      %v476 = vadd.s32 %v475, 8
      %v477 = vstv %s473
      %v478 = vadd.s32 %v477, %v475
      %v479 = vadd.s32 %v477, %v476
      %vm480 = vcmp.lt.s32.totalorder %v478, 8
      %vm481 = vcmp.lt.s32.totalorder %v479, 8
      %v482 = vsel %vm480, %v469, 0.0
      %v483 = vsel %vm481, %v471, 0.0
      %v484 = vadd.f32 %v482, %v483
      %v485 = vrot.slane %v484, 4
      %v486 = vadd.f32 %v484, %v485
      %v487 = vrot.slane %v486, 2
      %v488 = vadd.f32 %v486, %v487
      %v489 = vrot.slane %v488, 1
      %v490 = vadd.f32 %v488, %v489
      %v491 = vmul.f32 %v482, %v482
      %v492 = vmul.f32 %v483, %v483
      %v493 = vadd.f32 %v491, %v492
      %v494 = vrot.slane %v493, 4
      %v495 = vadd.f32 %v493, %v494
      %v496 = vrot.slane %v495, 2
      %v497 = vadd.f32 %v495, %v496
      %v498 = vrot.slane %v497, 1
      %v499 = vadd.f32 %v497, %v498
      %vm500 = vcmask 1040384
      %v501 = vsel %vm500, %v490, %v499
      %502 = vst [vmem:[%s214] sm:$0x3] %v501
      %v503 = vpack.c.bf16 %v469, %v469
      %v504 = vpack.c.bf16 %v471, %v471
      %505 = vst [vmem:[%s209] sm:$0xf] %v503
      %506 = vst [vmem:[%s209 + $0x4] sm:$0xf] %v504
      %s507 = smul.u32 2, %s16
      %p508 = scmp.lt.s32.totalorder %s507, 3
      %s509 = scalar_select %p508, %s507, 3
      %s510 = smul.addr %s509, 4
      %s511 = scalar_lea.vmem %s3, %s510
      %p512 = scmp.lt.s32.totalorder %s16, 1
      %s513 = scalar_select %p512, %s16, 1
      %s514 = smul.addr %s513, 2
      %s515 = scalar_lea.vmem %s4, %s514
      // Predicated region
      $region33: #{encoder_cnn_small_forward.3} parent=31 // pred_check
        %p516 = pneg %p102
      $region34: #{encoder_cnn_small_forward.3} parent=31 // pred_check_branch
        %518 = sbr.rel (%p516) target = $region36
      $region35: #{encoder_cnn_small_forward.3} parent=31 // pred_region
        %s519 = smul.u32 2, %s16
      $region36: #{encoder_cnn_small_forward.3} parent=31 // pred_fallthru
        _
      // Predicated region
      $region37: #{encoder_cnn_small_forward.3} parent=31 // pred_check
        %p520 = pneg %p128
      $region38: #{encoder_cnn_small_forward.3} parent=31 // pred_check_branch
        %522 = sbr.rel (%p520) target = $region40
      $region39: #{encoder_cnn_small_forward.3} parent=31 // pred_region
        _
      $region40: #{encoder_cnn_small_forward.3} parent=31 // pred_fallthru
        _
    $region32: #{encoder_cnn_small_forward.3} parent=5 // pred_fallthru
      _
    %p523 = scmp.le.s32.totalorder 2, %s11
    // Predicated region
    $region41: #{encoder_cnn_small_forward.3} parent=5 // pred_check
      %p524 = pneg %p523
    $region42: #{encoder_cnn_small_forward.3} parent=5 // pred_check_branch
      %526 = sbr.rel (%p524) target = $region44
    $region43: #{encoder_cnn_small_forward.3} parent=5 // pred_region
      %s527 = ssub.s32 %s11, 2
      // Predicated region
      $region45: #{encoder_cnn_small_forward.3} parent=43 // pred_check
        %p528 = pneg %p108
      $region46: #{encoder_cnn_small_forward.3} parent=43 // pred_check_branch
        %530 = sbr.rel (%p528) target = $region48
      $region47: #{encoder_cnn_small_forward.3} parent=43 // pred_region
        %s531 = smul.u32 2, %s17
        %p532 = scmp.lt.s32.totalorder %s531, 3
        %s533 = scalar_select %p532, %s531, 3
        %s534 = smul.addr %s533, 4
        %s535 = scalar_lea.vmem %s3, %s534
      $region48: #{encoder_cnn_small_forward.3} parent=43 // pred_fallthru
        _
      // Predicated region
      $region49: #{encoder_cnn_small_forward.3} parent=43 // pred_check
        %p536 = pneg %p134
      $region50: #{encoder_cnn_small_forward.3} parent=43 // pred_check_branch
        %538 = sbr.rel (%p536) target = $region52
      $region51: #{encoder_cnn_small_forward.3} parent=43 // pred_region
        %p539 = scmp.lt.s32.totalorder %s17, 1
        %s540 = scalar_select %p539, %s17, 1
        %s541 = smul.addr %s540, 2
        %s542 = scalar_lea.vmem %s4, %s541
      $region52: #{encoder_cnn_small_forward.3} parent=43 // pred_fallthru
        _
    $region44: #{encoder_cnn_small_forward.3} parent=5 // pred_fallthru
      _
  $region6: #{encoder_cnn_small_forward.3} parent=0 // loop_footer
    %s15 = sadd.s32 1, %s11
  $region7: #{encoder_cnn_small_forward.3} parent=0 // loop_footer_branch
    %10 = sbr.rel target = $region3
  $region8: #{encoder_cnn_small_forward.3} parent=0 // loop_exit
    _

// kernel: encoder_cnn_small_forward.5
$region0: #{encoder_cnn_small_forward.5}
  #allocation0 [shape = 'u32[]', space=smem, size = 0x4, offset = 0x4, fixed_abs, tag = 'smem constant byte address 0x4 - core index']
  #allocation1 [shape = 'u32[72,128]{1,0:T(1,128)}', space=vmem, size = 0x9000, scoped, tag = 'internal scratch']
  %s0 = inlined_call_operand.vmem [shape: bf16[32,128], index: 0, kind: input, shape index: {}]
  %s1 = inlined_call_operand.vmem [shape: bf16[128,128], index: 1, kind: input, shape index: {}]
  %s2 = inlined_call_operand.vmem [shape: f32[1,128], index: 2, kind: input, shape index: {}]
  %s3 = inlined_call_operand.vmem [shape: bf16[128,128], index: 3, kind: input, shape index: {}]
  %s4 = inlined_call_operand.vmem [shape: f32[1,128], index: 4, kind: input, shape index: {}]
  %s5 = inlined_call_operand.vmem [shape: f32[1,128], index: 5, kind: input, shape index: {}]
  %s6 = inlined_call_operand.vmem [shape: f32[1,128], index: 6, kind: input, shape index: {}]
  %s7 = inlined_call_operand.vmem [shape: bf16[128,128], index: 7, kind: input, shape index: {}]
  %s8 = inlined_call_operand.vmem [shape: f32[1,128], index: 8, kind: input, shape index: {}]
  %s9 = inlined_call_operand.vmem [shape: bf16[32,128], index: 9, kind: output, shape index: {}]
  %s10 = sld [smem:[#allocation0]]
  $region69: #{encoder_cnn_small_forward.5} parent=0
    _
  %s12 = ssub.s32 1, %s10
  %s13 = scalar_select 0, %s12, %s10
  loop: start=0, step=1, limit=4
  $region2: #{encoder_cnn_small_forward.5} parent=0 // loop_pre_header
    _
  $region3: #{encoder_cnn_small_forward.5} parent=0 // loop_header
    %s15 = sphi 0, %s19
    %p16 = scmp.ge.s32.totalorder %s15, 4
    %s25 = sphi 0, %s27
    %s28 = sphi 0, %s25
    %s29 = sphi 0, %s28
    %s45 = sphi 0, %s29
    %s49 = sphi 0, %s49
    %s51 = sphi 0, %s49
    %s52 = sphi 0, %s51
    %s66 = sphi 0, %s52
    %s70 = sphi 0, %s70
    %s72 = sphi 0, %s70
    %s73 = sphi 0, %s72
    %s87 = sphi 0, %s73
    %s91 = sphi 0, %s91
    %s93 = sphi 0, %s91
    %s94 = sphi 0, %s93
    %s108 = sphi 0, %s94
    %s112 = sphi 0, %s112
    %s114 = sphi 0, %s112
    %s115 = sphi 0, %s114
    %s129 = sphi 0, %s115
    %s133 = sphi 0, %s133
    %s135 = sphi 0, %s133
    %s136 = sphi 0, %s135
    %s150 = sphi 0, %s136
    %s154 = sphi 0, %s154
    %s156 = sphi 0, %s154
    %s157 = sphi 0, %s156
    %s171 = sphi 0, %s157
    %s175 = sphi 0, %s175
    %s177 = sphi 0, %s175
    %s178 = sphi 0, %s177
    %s192 = sphi 0, %s178
    %s196 = sphi 0, %s196
    %s198 = sphi 0, %s196
    %s199 = sphi 0, %s198
    %s213 = sphi 0, %s199
    %s219 = sphi 0, %s221
    %s222 = sphi 0, %s219
    %s223 = sphi 0, %s222
    %s239 = sphi 0, %s223
  $region4: #{encoder_cnn_small_forward.5} parent=0 // loop_header_branch
    %18 = sbr.rel (%p16) target = $region8
  $region5: #{encoder_cnn_small_forward.5} parent=0 // loop_body
    %s20 = ssub.s32 %s15, 1
    %s21 = ssub.s32 %s15, 2
    %s22 = sadd.s32 %s15, 1
    %s23 = ssub.s32 %s15, %s22
    %p24 = scmp.eq.s32.totalorder %s23, 0
    %s26 = sadd.s32 %s25, 1
    %s27 = scalar_select %p24, %s25, %s26
    %p30 = pneg %p24
    %p31 = scmp.eq.s32.totalorder %s15, 1
    %p32 = por %p30, %p31
    %p33 = scmp.ne.s32.totalorder %s25, %s28
    %p34 = scmp.eq.s32.totalorder %s15, 0
    %p35 = por %p33, %p34
    %p36 = scmp.ne.s32.totalorder %s25, %s28
    %p37 = scmp.eq.s32.totalorder %s20, 1
    %p38 = por %p36, %p37
    %p39 = scmp.ne.s32.totalorder %s28, %s29
    %p40 = scmp.eq.s32.totalorder %s20, 0
    %p41 = por %p39, %p40
    %p42 = scmp.ne.s32.totalorder %s28, %s29
    %p43 = scmp.eq.s32.totalorder %s21, 1
    %p44 = por %p42, %p43
    %p46 = scmp.ne.s32.totalorder %s29, %s45
    %p47 = scmp.eq.s32.totalorder %s21, 0
    %p48 = por %p46, %p47
    %s50 = sadd.s32 %s49, 1
    %p53 = scmp.eq.s32.totalorder %s15, 1
    %p54 = scmp.ne.s32.totalorder %s49, %s51
    %p55 = scmp.eq.s32.totalorder %s15, 0
    %p56 = por %p54, %p55
    %p57 = scmp.ne.s32.totalorder %s49, %s51
    %p58 = scmp.eq.s32.totalorder %s20, 1
    %p59 = por %p57, %p58
    %p60 = scmp.ne.s32.totalorder %s51, %s52
    %p61 = scmp.eq.s32.totalorder %s20, 0
    %p62 = por %p60, %p61
    %p63 = scmp.ne.s32.totalorder %s51, %s52
    %p64 = scmp.eq.s32.totalorder %s21, 1
    %p65 = por %p63, %p64
    %p67 = scmp.ne.s32.totalorder %s52, %s66
    %p68 = scmp.eq.s32.totalorder %s21, 0
    %p69 = por %p67, %p68
    %s71 = sadd.s32 %s70, 1
    %p74 = scmp.eq.s32.totalorder %s15, 1
    %p75 = scmp.ne.s32.totalorder %s70, %s72
    %p76 = scmp.eq.s32.totalorder %s15, 0
    %p77 = por %p75, %p76
    %p78 = scmp.ne.s32.totalorder %s70, %s72
    %p79 = scmp.eq.s32.totalorder %s20, 1
    %p80 = por %p78, %p79
    %p81 = scmp.ne.s32.totalorder %s72, %s73
    %p82 = scmp.eq.s32.totalorder %s20, 0
    %p83 = por %p81, %p82
    %p84 = scmp.ne.s32.totalorder %s72, %s73
    %p85 = scmp.eq.s32.totalorder %s21, 1
    %p86 = por %p84, %p85
    %p88 = scmp.ne.s32.totalorder %s73, %s87
    %p89 = scmp.eq.s32.totalorder %s21, 0
    %p90 = por %p88, %p89
    %s92 = sadd.s32 %s91, 1
    %p95 = scmp.eq.s32.totalorder %s15, 1
    %p96 = scmp.ne.s32.totalorder %s91, %s93
    %p97 = scmp.eq.s32.totalorder %s15, 0
    %p98 = por %p96, %p97
    %p99 = scmp.ne.s32.totalorder %s91, %s93
    %p100 = scmp.eq.s32.totalorder %s20, 1
    %p101 = por %p99, %p100
    %p102 = scmp.ne.s32.totalorder %s93, %s94
    %p103 = scmp.eq.s32.totalorder %s20, 0
    %p104 = por %p102, %p103
    %p105 = scmp.ne.s32.totalorder %s93, %s94
    %p106 = scmp.eq.s32.totalorder %s21, 1
    %p107 = por %p105, %p106
    %p109 = scmp.ne.s32.totalorder %s94, %s108
    %p110 = scmp.eq.s32.totalorder %s21, 0
    %p111 = por %p109, %p110
    %s113 = sadd.s32 %s112, 1
    %p116 = scmp.eq.s32.totalorder %s15, 1
    %p117 = scmp.ne.s32.totalorder %s112, %s114
    %p118 = scmp.eq.s32.totalorder %s15, 0
    %p119 = por %p117, %p118
    %p120 = scmp.ne.s32.totalorder %s112, %s114
    %p121 = scmp.eq.s32.totalorder %s20, 1
    %p122 = por %p120, %p121
    %p123 = scmp.ne.s32.totalorder %s114, %s115
    %p124 = scmp.eq.s32.totalorder %s20, 0
    %p125 = por %p123, %p124
    %p126 = scmp.ne.s32.totalorder %s114, %s115
    %p127 = scmp.eq.s32.totalorder %s21, 1
    %p128 = por %p126, %p127
    %p130 = scmp.ne.s32.totalorder %s115, %s129
    %p131 = scmp.eq.s32.totalorder %s21, 0
    %p132 = por %p130, %p131
    %s134 = sadd.s32 %s133, 1
    %p137 = scmp.eq.s32.totalorder %s15, 1
    %p138 = scmp.ne.s32.totalorder %s133, %s135
    %p139 = scmp.eq.s32.totalorder %s15, 0
    %p140 = por %p138, %p139
    %p141 = scmp.ne.s32.totalorder %s133, %s135
    %p142 = scmp.eq.s32.totalorder %s20, 1
    %p143 = por %p141, %p142
    %p144 = scmp.ne.s32.totalorder %s135, %s136
    %p145 = scmp.eq.s32.totalorder %s20, 0
    %p146 = por %p144, %p145
    %p147 = scmp.ne.s32.totalorder %s135, %s136
    %p148 = scmp.eq.s32.totalorder %s21, 1
    %p149 = por %p147, %p148
    %p151 = scmp.ne.s32.totalorder %s136, %s150
    %p152 = scmp.eq.s32.totalorder %s21, 0
    %p153 = por %p151, %p152
    %s155 = sadd.s32 %s154, 1
    %p158 = scmp.eq.s32.totalorder %s15, 1
    %p159 = scmp.ne.s32.totalorder %s154, %s156
    %p160 = scmp.eq.s32.totalorder %s15, 0
    %p161 = por %p159, %p160
    %p162 = scmp.ne.s32.totalorder %s154, %s156
    %p163 = scmp.eq.s32.totalorder %s20, 1
    %p164 = por %p162, %p163
    %p165 = scmp.ne.s32.totalorder %s156, %s157
    %p166 = scmp.eq.s32.totalorder %s20, 0
    %p167 = por %p165, %p166
    %p168 = scmp.ne.s32.totalorder %s156, %s157
    %p169 = scmp.eq.s32.totalorder %s21, 1
    %p170 = por %p168, %p169
    %p172 = scmp.ne.s32.totalorder %s157, %s171
    %p173 = scmp.eq.s32.totalorder %s21, 0
    %p174 = por %p172, %p173
    %s176 = sadd.s32 %s175, 1
    %p179 = scmp.eq.s32.totalorder %s15, 1
    %p180 = scmp.ne.s32.totalorder %s175, %s177
    %p181 = scmp.eq.s32.totalorder %s15, 0
    %p182 = por %p180, %p181
    %p183 = scmp.ne.s32.totalorder %s175, %s177
    %p184 = scmp.eq.s32.totalorder %s20, 1
    %p185 = por %p183, %p184
    %p186 = scmp.ne.s32.totalorder %s177, %s178
    %p187 = scmp.eq.s32.totalorder %s20, 0
    %p188 = por %p186, %p187
    %p189 = scmp.ne.s32.totalorder %s177, %s178
    %p190 = scmp.eq.s32.totalorder %s21, 1
    %p191 = por %p189, %p190
    %p193 = scmp.ne.s32.totalorder %s178, %s192
    %p194 = scmp.eq.s32.totalorder %s21, 0
    %p195 = por %p193, %p194
    %s197 = sadd.s32 %s196, 1
    %p200 = scmp.eq.s32.totalorder %s15, 1
    %p201 = scmp.ne.s32.totalorder %s196, %s198
    %p202 = scmp.eq.s32.totalorder %s15, 0
    %p203 = por %p201, %p202
    %p204 = scmp.ne.s32.totalorder %s196, %s198
    %p205 = scmp.eq.s32.totalorder %s20, 1
    %p206 = por %p204, %p205
    %p207 = scmp.ne.s32.totalorder %s198, %s199
    %p208 = scmp.eq.s32.totalorder %s20, 0
    %p209 = por %p207, %p208
    %p210 = scmp.ne.s32.totalorder %s198, %s199
    %p211 = scmp.eq.s32.totalorder %s21, 1
    %p212 = por %p210, %p211
    %p214 = scmp.ne.s32.totalorder %s199, %s213
    %p215 = scmp.eq.s32.totalorder %s21, 0
    %p216 = por %p214, %p215
    %s217 = ssub.s32 %s15, %s22
    %p218 = scmp.eq.s32.totalorder %s217, 0
    %s220 = sadd.s32 %s219, 1
    %s221 = scalar_select %p218, %s219, %s220
    %p224 = pneg %p218
    %p225 = scmp.eq.s32.totalorder %s15, 1
    %p226 = por %p224, %p225
    %p227 = scmp.ne.s32.totalorder %s219, %s222
    %p228 = scmp.eq.s32.totalorder %s15, 0
    %p229 = por %p227, %p228
    %p230 = scmp.ne.s32.totalorder %s219, %s222
    %p231 = scmp.eq.s32.totalorder %s20, 1
    %p232 = por %p230, %p231
    %p233 = scmp.ne.s32.totalorder %s222, %s223
    %p234 = scmp.eq.s32.totalorder %s20, 0
    %p235 = por %p233, %p234
    %p236 = scmp.ne.s32.totalorder %s222, %s223
    %p237 = scmp.eq.s32.totalorder %s21, 1
    %p238 = por %p236, %p237
    %p240 = scmp.ne.s32.totalorder %s223, %s239
    %p241 = scmp.eq.s32.totalorder %s21, 0
    %p242 = por %p240, %p241
    %p243 = scmp.le.s32.totalorder 1, %s15
    %p244 = scmp.lt.s32.totalorder %s15, 3
    %p245 = pnand %p243, %p244
    %p246 = pneg %p245
    // Predicated region
    $region9: #{encoder_cnn_small_forward.5} parent=5 // pred_check
      _
    $region10: #{encoder_cnn_small_forward.5} parent=5 // pred_check_branch
      %248 = sbr.rel (%p245) target = $region12
    $region11: #{encoder_cnn_small_forward.5} parent=5 // pred_region
      %s249 = ssub.s32 %s15, 1
      // Predicated region
      $region13: #{encoder_cnn_small_forward.5} parent=11 // pred_check
        %p250 = pneg %p62
      $region14: #{encoder_cnn_small_forward.5} parent=11 // pred_check_branch
        %252 = sbr.rel (%p250) target = $region16
      $region15: #{encoder_cnn_small_forward.5} parent=11 // pred_region
        _
      $region16: #{encoder_cnn_small_forward.5} parent=11 // pred_fallthru
        _
      // Predicated region
      $region17: #{encoder_cnn_small_forward.5} parent=11 // pred_check
        %p253 = pneg %p83
      $region18: #{encoder_cnn_small_forward.5} parent=11 // pred_check_branch
        %255 = sbr.rel (%p253) target = $region20
      $region19: #{encoder_cnn_small_forward.5} parent=11 // pred_region
        _
      $region20: #{encoder_cnn_small_forward.5} parent=11 // pred_fallthru
        _
      // Predicated region
      $region21: #{encoder_cnn_small_forward.5} parent=11 // pred_check
        %p256 = pneg %p104
      $region22: #{encoder_cnn_small_forward.5} parent=11 // pred_check_branch
        %258 = sbr.rel (%p256) target = $region24
      $region23: #{encoder_cnn_small_forward.5} parent=11 // pred_region
        _
      $region24: #{encoder_cnn_small_forward.5} parent=11 // pred_fallthru
        _
      // Predicated region
      $region25: #{encoder_cnn_small_forward.5} parent=11 // pred_check
        %p259 = pneg %p125
      $region26: #{encoder_cnn_small_forward.5} parent=11 // pred_check_branch
        %261 = sbr.rel (%p259) target = $region28
      $region27: #{encoder_cnn_small_forward.5} parent=11 // pred_region
        _
      $region28: #{encoder_cnn_small_forward.5} parent=11 // pred_fallthru
        _
      // Predicated region
      $region29: #{encoder_cnn_small_forward.5} parent=11 // pred_check
        %p262 = pneg %p146
      $region30: #{encoder_cnn_small_forward.5} parent=11 // pred_check_branch
        %264 = sbr.rel (%p262) target = $region32
      $region31: #{encoder_cnn_small_forward.5} parent=11 // pred_region
        _
      $region32: #{encoder_cnn_small_forward.5} parent=11 // pred_fallthru
        _
      // Predicated region
      $region33: #{encoder_cnn_small_forward.5} parent=11 // pred_check
        %p265 = pneg %p167
      $region34: #{encoder_cnn_small_forward.5} parent=11 // pred_check_branch
        %267 = sbr.rel (%p265) target = $region36
      $region35: #{encoder_cnn_small_forward.5} parent=11 // pred_region
        _
      $region36: #{encoder_cnn_small_forward.5} parent=11 // pred_fallthru
        _
      // Predicated region
      $region37: #{encoder_cnn_small_forward.5} parent=11 // pred_check
        %p268 = pneg %p188
      $region38: #{encoder_cnn_small_forward.5} parent=11 // pred_check_branch
        %270 = sbr.rel (%p268) target = $region40
      $region39: #{encoder_cnn_small_forward.5} parent=11 // pred_region
        _
      $region40: #{encoder_cnn_small_forward.5} parent=11 // pred_fallthru
        _
      // Predicated region
      $region41: #{encoder_cnn_small_forward.5} parent=11 // pred_check
        %p271 = pneg %p209
      $region42: #{encoder_cnn_small_forward.5} parent=11 // pred_check_branch
        %273 = sbr.rel (%p271) target = $region44
      $region43: #{encoder_cnn_small_forward.5} parent=11 // pred_region
        _
      $region44: #{encoder_cnn_small_forward.5} parent=11 // pred_fallthru
        _
    $region12: #{encoder_cnn_small_forward.5} parent=5 // pred_fallthru
      _
    %p274 = scmp.lt.s32.totalorder %s15, 2
    // Predicated region
    $region45: #{encoder_cnn_small_forward.5} parent=5 // pred_check
      %p275 = pneg %p274
    $region46: #{encoder_cnn_small_forward.5} parent=5 // pred_check_branch
      %277 = sbr.rel (%p275) target = $region48
    $region47: #{encoder_cnn_small_forward.5} parent=5 // pred_region
      // Predicated region
      $region49: #{encoder_cnn_small_forward.5} parent=47 // pred_check
        %p278 = pneg %p35
      $region50: #{encoder_cnn_small_forward.5} parent=47 // pred_check_branch
        %280 = sbr.rel (%p278) target = $region52
      $region51: #{encoder_cnn_small_forward.5} parent=47 // pred_region
        %s281 = smul.u32 2, %s15
        %p282 = scmp.lt.s32.totalorder %s281, 3
        %s283 = scalar_select %p282, %s281, 3
        %s284 = smul.addr %s283, 4
        %s285 = scalar_lea.vmem %s0, %s284
        %s286 = smul.u32 2, %s15
      $region52: #{encoder_cnn_small_forward.5} parent=47 // pred_fallthru
        _
    $region48: #{encoder_cnn_small_forward.5} parent=5 // pred_fallthru
      _
    %p287 = scmp.le.s32.totalorder 1, %s15
    %p288 = scmp.lt.s32.totalorder %s15, 3
    %p289 = pnand %p287, %p288
    %p290 = pneg %p289
    // Predicated region
    $region53: #{encoder_cnn_small_forward.5} parent=5 // pred_check
      _
    $region54: #{encoder_cnn_small_forward.5} parent=5 // pred_check_branch
      %292 = sbr.rel (%p289) target = $region56
    $region55: #{encoder_cnn_small_forward.5} parent=5 // pred_region
      %s293 = ssub.s32 %s15, 1
      %s294 = smul.u32 2, %s20
      %p295 = scmp.lt.s32.totalorder %s294, 3
      %s296 = scalar_select %p295, %s294, 3
      %s297 = smul.addr %s296, 4
      %s298 = scalar_lea.vmem %s0, %s297
      %p299 = pneg %p41
      %p300 = pneg %p38
      %p301 = pneg %p62
      %p302 = pneg %p59
      %p303 = pneg %p83
      %p304 = pneg %p80
      %p305 = pneg %p104
      %p306 = pneg %p101
      %p307 = pneg %p125
      %p308 = pneg %p122
      %p309 = pneg %p146
      %p310 = pneg %p143
      %p311 = pneg %p167
      %p312 = pneg %p164
      %p313 = pneg %p188
      %p314 = pneg %p185
      %p315 = pneg %p209
      %p316 = pneg %p206
      %p317 = pneg %p235
      %p318 = pneg %p232
      %s319 = smul.u32 2, %s20
      %p320 = scmp.lt.s32.totalorder %s319, 3
      %s321 = scalar_select %p320, %s319, 3
      %s322 = smul.addr %s321, 4
      %s323 = scalar_lea.vmem %s9, %s322
      %s324 = smul.u32 2, %s20
      %p325 = scmp.lt.s32.totalorder %s324, 3
      %s326 = scalar_select %p325, %s324, 3
      %s327 = smul.addr %s326, 4
      %s328 = scalar_lea.vmem %s0, %s327
      %s329 = smul.u32 2, %s20
      %s330 = smul.u32 2, %s20
      %p331 = scmp.lt.s32.totalorder %s330, 3
      %s332 = scalar_select %p331, %s330, 3
      %s333 = smul.addr %s332, 4
      %s334 = scalar_lea.vmem %s9, %s333
      %s335 = smul.u32 2, %s20
      %v336 = vld [vmem:[%s328] sm:$0xf]
      %v337 = vld [vmem:[%s328 + $0x4] sm:$0xf]
      %v338 = vld [vmem:[%s1] sm:$0xf]
      %v339 = vld [vmem:[%s1 + $0x4] sm:$0xf]
      %v340 = vld [vmem:[%s1 + $0x8] sm:$0xf]
      %v341 = vld [vmem:[%s1 + $0xc] sm:$0xf]
      %v342 = vld [vmem:[%s1 + $0x10] sm:$0xf]
      %v343 = vld [vmem:[%s1 + $0x14] sm:$0xf]
      %v344 = vld [vmem:[%s1 + $0x18] sm:$0xf]
      %v345 = vld [vmem:[%s1 + $0x1c] sm:$0xf]
      %v346 = vld [vmem:[%s1 + $0x20] sm:$0xf]
      %v347 = vld [vmem:[%s1 + $0x24] sm:$0xf]
      %v348 = vld [vmem:[%s1 + $0x28] sm:$0xf]
      %v349 = vld [vmem:[%s1 + $0x2c] sm:$0xf]
      %v350 = vld [vmem:[%s1 + $0x30] sm:$0xf]
      %v351 = vld [vmem:[%s1 + $0x34] sm:$0xf]
      %v352 = vld [vmem:[%s1 + $0x38] sm:$0xf]
      %v353 = vld [vmem:[%s1 + $0x3c] sm:$0xf]
      %v354 = vld [vmem:[%s2] sm:$0x1]
      %v356 = vperm.slane %v354, 0
      %v360 = vunpack.c.l.b16 %v336
      %v361 = vunpack.c.l.b16 %v337
      %v362 = vpack.c.b16 %v361, %v360
      %v380 = vunpack.c.l.b16 %v338
      %v381 = vunpack.c.l.b16 %v339
      %v382 = vunpack.c.l.b16 %v340
      %v383 = vunpack.c.l.b16 %v341
      %v384 = vunpack.c.l.b16 %v342
      %v385 = vunpack.c.l.b16 %v343
      %v386 = vunpack.c.l.b16 %v344
      %v387 = vunpack.c.l.b16 %v345
      %v388 = vunpack.c.l.b16 %v346
      %v389 = vunpack.c.l.b16 %v347
      %v390 = vunpack.c.l.b16 %v348
      %v391 = vunpack.c.l.b16 %v349
      %v392 = vunpack.c.l.b16 %v350
      %v393 = vunpack.c.l.b16 %v351
      %v394 = vunpack.c.l.b16 %v352
      %v395 = vunpack.c.l.b16 %v353
      %v396 = vpack.c.b16 %v381, %v380
      %v397 = vpack.c.b16 %v383, %v382
      %v398 = vpack.c.b16 %v385, %v384
      %v399 = vpack.c.b16 %v387, %v386
      %v400 = vpack.c.b16 %v389, %v388
      %v401 = vpack.c.b16 %v391, %v390
      %v402 = vpack.c.b16 %v393, %v392
      %v403 = vpack.c.b16 %v395, %v394
      %412 = vmatpush.bf16.msra.mxu0 %v403
      %413 = vmatpush.bf16.msra.mxu0 %v402
      %414 = vmatpush.bf16.msra.mxu0 %v401
      %415 = vmatpush.bf16.msra.mxu0 %v400
      %416 = vmatpush.bf16.msra.mxu0 %v399
      %417 = vmatpush.bf16.msra.mxu0 %v398
      %418 = vmatpush.bf16.msra.mxu0 %v397
      %419 = vmatpush.bf16.msra.mxu0 %v396
      %420 = vmatmul.bf16.gmra.mxu0 %v362
      %v421 = vpop.f32.mrf.mxu0
      %v422 = vadd.f32 %v356, %v421
      %v423 = vpop.f32.mrf.mxu0
      %v424 = vadd.f32 %v356, %v423
      %425 = vdwg.mxu0
      %v426 = vmax.f32 %v422, 0.0
      %v427 = vmax.f32 %v424, 0.0
      %v428 = vpack.c.bf16 %v427, %v426
      %v429 = vld [vmem:[%s3] sm:$0xf]
      %v430 = vld [vmem:[%s3 + $0x4] sm:$0xf]
      %v431 = vld [vmem:[%s3 + $0x8] sm:$0xf]
      %v432 = vld [vmem:[%s3 + $0xc] sm:$0xf]
      %v433 = vld [vmem:[%s3 + $0x10] sm:$0xf]
      %v434 = vld [vmem:[%s3 + $0x14] sm:$0xf]
      %v435 = vld [vmem:[%s3 + $0x18] sm:$0xf]
      %v436 = vld [vmem:[%s3 + $0x1c] sm:$0xf]
      %v437 = vld [vmem:[%s3 + $0x20] sm:$0xf]
      %v438 = vld [vmem:[%s3 + $0x24] sm:$0xf]
      %v439 = vld [vmem:[%s3 + $0x28] sm:$0xf]
      %v440 = vld [vmem:[%s3 + $0x2c] sm:$0xf]
      %v441 = vld [vmem:[%s3 + $0x30] sm:$0xf]
      %v442 = vld [vmem:[%s3 + $0x34] sm:$0xf]
      %v443 = vld [vmem:[%s3 + $0x38] sm:$0xf]
      %v444 = vld [vmem:[%s3 + $0x3c] sm:$0xf]
      %v445 = vld [vmem:[%s4] sm:$0x1]
      %v447 = vperm.slane %v445, 0
      %v465 = vunpack.c.l.b16 %v429
      %v466 = vunpack.c.l.b16 %v430
      %v467 = vunpack.c.l.b16 %v431
      %v468 = vunpack.c.l.b16 %v432
      %v469 = vunpack.c.l.b16 %v433
      %v470 = vunpack.c.l.b16 %v434
      %v471 = vunpack.c.l.b16 %v435
      %v472 = vunpack.c.l.b16 %v436
      %v473 = vunpack.c.l.b16 %v437
      %v474 = vunpack.c.l.b16 %v438
      %v475 = vunpack.c.l.b16 %v439
      %v476 = vunpack.c.l.b16 %v440
      %v477 = vunpack.c.l.b16 %v441
      %v478 = vunpack.c.l.b16 %v442
      %v479 = vunpack.c.l.b16 %v443
      %v480 = vunpack.c.l.b16 %v444
      %v481 = vpack.c.b16 %v466, %v465
      %v482 = vpack.c.b16 %v468, %v467
      %v483 = vpack.c.b16 %v470, %v469
      %v484 = vpack.c.b16 %v472, %v471
      %v485 = vpack.c.b16 %v474, %v473
      %v486 = vpack.c.b16 %v476, %v475
      %v487 = vpack.c.b16 %v478, %v477
      %v488 = vpack.c.b16 %v480, %v479
      %497 = vmatpush.bf16.msra.mxu0 %v488
      %498 = vmatpush.bf16.msra.mxu0 %v487
      %499 = vmatpush.bf16.msra.mxu0 %v486
      %500 = vmatpush.bf16.msra.mxu0 %v485
      %501 = vmatpush.bf16.msra.mxu0 %v484
      %502 = vmatpush.bf16.msra.mxu0 %v483
      %503 = vmatpush.bf16.msra.mxu0 %v482
      %504 = vmatpush.bf16.msra.mxu0 %v481
      %505 = vmatmul.bf16.gmra.mxu0 %v428
      %v506 = vpop.f32.mrf.mxu0
      %v507 = vadd.f32 %v447, %v506
      %v508 = vpop.f32.mrf.mxu0
      %v509 = vadd.f32 %v447, %v508
      %510 = vdwg.mxu0
      %511 = vadd.xlane.f32.xlu0 %v507
      %v512 = vpop.xlane.xlu0 %511
      %513 = vadd.xlane.f32.xlu0 %v509
      %v514 = vpop.xlane.xlu0 %513
      %v515 = vmul.f32 %v512, 0.03125
      %v516 = vmul.f32 %v514, 0.03125
      %v517 = vmul.f32 %v507, %v507
      %v518 = vmul.f32 %v509, %v509
      %519 = vadd.xlane.f32.xlu0 %v517
      %v520 = vpop.xlane.xlu0 %519
      %521 = vadd.xlane.f32.xlu0 %v518
      %v522 = vpop.xlane.xlu0 %521
      %v523 = vmul.f32 %v520, 0.03125
      %v524 = vmul.f32 %v522, 0.03125
      %v525 = vmul.f32 %v515, %v515
      %v526 = vmul.f32 %v516, %v516
      %v527 = vsub.f32 %v523, %v525
      %v528 = vsub.f32 %v524, %v526
      %v529 = vmax.f32 %v527, 0.0
      %v530 = vmax.f32 %v528, 0.0
      %v531 = vsub.f32 %v507, %v515
      %v532 = vsub.f32 %v509, %v516
      %v533 = vadd.f32 %v529, 1e-05
      %v534 = vadd.f32 %v530, 1e-05
      %v535 = vrsqrt.pop %v533
      %v536 = vmul.f32 %v535, %v533
      %v537 = vmul.f32 %v536, %v535
      %v538 = vmul.f32 0.5, %v537
      %v539 = vsub.f32 1.5, %v538
      %v540 = vmul.f32 %v535, %v539
      %vm541 = vweird.f32 %v533
      %vm542 = vweird.f32 %v535
      %vm543 = vmor %vm541, %vm542
      %v544 = vsel %vm543, %v535, %v540
      %v545 = vrsqrt.pop %v534
      %v546 = vmul.f32 %v545, %v534
      %v547 = vmul.f32 %v546, %v545
      %v548 = vmul.f32 0.5, %v547
      %v549 = vsub.f32 1.5, %v548
      %v550 = vmul.f32 %v545, %v549
      %vm551 = vweird.f32 %v534
      %vm552 = vweird.f32 %v545
      %vm553 = vmor %vm551, %vm552
      %v554 = vsel %vm553, %v545, %v550
      %v555 = vmul.f32 %v531, %v544
      %v556 = vmul.f32 %v532, %v554
      %v557 = vld [vmem:[%s5] sm:$0x1]
      %v559 = vperm.slane %v557, 0
      %v561 = vmul.f32 %v555, %v559
      %v562 = vmul.f32 %v556, %v559
      %v563 = vld [vmem:[%s6] sm:$0x1]
      %v565 = vperm.slane %v563, 0
      %v567 = vadd.f32 %v561, %v565
      %v568 = vadd.f32 %v562, %v565
      %v569 = vmax.f32 %v567, 0.0
      %v570 = vmax.f32 %v568, 0.0
      %v571 = vpack.c.bf16 %v570, %v569
      %v572 = vld [vmem:[%s7] sm:$0xf]
      %v573 = vld [vmem:[%s7 + $0x4] sm:$0xf]
      %v574 = vld [vmem:[%s7 + $0x8] sm:$0xf]
      %v575 = vld [vmem:[%s7 + $0xc] sm:$0xf]
      %v576 = vld [vmem:[%s7 + $0x10] sm:$0xf]
      %v577 = vld [vmem:[%s7 + $0x14] sm:$0xf]
      %v578 = vld [vmem:[%s7 + $0x18] sm:$0xf]
      %v579 = vld [vmem:[%s7 + $0x1c] sm:$0xf]
      %v580 = vld [vmem:[%s7 + $0x20] sm:$0xf]
      %v581 = vld [vmem:[%s7 + $0x24] sm:$0xf]
      %v582 = vld [vmem:[%s7 + $0x28] sm:$0xf]
      %v583 = vld [vmem:[%s7 + $0x2c] sm:$0xf]
      %v584 = vld [vmem:[%s7 + $0x30] sm:$0xf]
      %v585 = vld [vmem:[%s7 + $0x34] sm:$0xf]
      %v586 = vld [vmem:[%s7 + $0x38] sm:$0xf]
      %v587 = vld [vmem:[%s7 + $0x3c] sm:$0xf]
      %v588 = vld [vmem:[%s8] sm:$0x1]
      %v590 = vperm.slane %v588, 0
      %v608 = vunpack.c.l.b16 %v572
      %v609 = vunpack.c.l.b16 %v573
      %v610 = vunpack.c.l.b16 %v574
      %v611 = vunpack.c.l.b16 %v575
      %v612 = vunpack.c.l.b16 %v576
      %v613 = vunpack.c.l.b16 %v577
      %v614 = vunpack.c.l.b16 %v578
      %v615 = vunpack.c.l.b16 %v579
      %v616 = vunpack.c.l.b16 %v580
      %v617 = vunpack.c.l.b16 %v581
      %v618 = vunpack.c.l.b16 %v582
      %v619 = vunpack.c.l.b16 %v583
      %v620 = vunpack.c.l.b16 %v584
      %v621 = vunpack.c.l.b16 %v585
      %v622 = vunpack.c.l.b16 %v586
      %v623 = vunpack.c.l.b16 %v587
      %v624 = vpack.c.b16 %v609, %v608
      %v625 = vpack.c.b16 %v611, %v610
      %v626 = vpack.c.b16 %v613, %v612
      %v627 = vpack.c.b16 %v615, %v614
      %v628 = vpack.c.b16 %v617, %v616
      %v629 = vpack.c.b16 %v619, %v618
      %v630 = vpack.c.b16 %v621, %v620
      %v631 = vpack.c.b16 %v623, %v622
      %640 = vmatpush.bf16.msra.mxu0 %v631
      %641 = vmatpush.bf16.msra.mxu0 %v630
      %642 = vmatpush.bf16.msra.mxu0 %v629
      %643 = vmatpush.bf16.msra.mxu0 %v628
      %644 = vmatpush.bf16.msra.mxu0 %v627
      %645 = vmatpush.bf16.msra.mxu0 %v626
      %646 = vmatpush.bf16.msra.mxu0 %v625
      %647 = vmatpush.bf16.msra.mxu0 %v624
      %648 = vmatmul.bf16.gmra.mxu0 %v571
      %v649 = vpop.f32.mrf.mxu0
      %v650 = vadd.f32 %v590, %v649
      %v651 = vpop.f32.mrf.mxu0
      %v652 = vadd.f32 %v590, %v651
      %653 = vdwg.mxu0
      %v654 = vpack.c.bf16 %v650, %v650
      %v655 = vpack.c.bf16 %v652, %v652
      %656 = vst [vmem:[%s334] sm:$0xf] %v654
      %657 = vst [vmem:[%s334 + $0x4] sm:$0xf] %v655
      %s658 = smul.u32 2, %s20
      %p659 = scmp.lt.s32.totalorder %s658, 3
      %s660 = scalar_select %p659, %s658, 3
      %s661 = smul.addr %s660, 4
      %s662 = scalar_lea.vmem %s9, %s661
      // Predicated region
      $region57: #{encoder_cnn_small_forward.5} parent=55 // pred_check
        %p663 = pneg %p232
      $region58: #{encoder_cnn_small_forward.5} parent=55 // pred_check_branch
        %665 = sbr.rel (%p663) target = $region60
      $region59: #{encoder_cnn_small_forward.5} parent=55 // pred_region
        %s666 = smul.u32 2, %s20
      $region60: #{encoder_cnn_small_forward.5} parent=55 // pred_fallthru
        _
    $region56: #{encoder_cnn_small_forward.5} parent=5 // pred_fallthru
      _
    %p667 = scmp.le.s32.totalorder 2, %s15
    // Predicated region
    $region61: #{encoder_cnn_small_forward.5} parent=5 // pred_check
      %p668 = pneg %p667
    $region62: #{encoder_cnn_small_forward.5} parent=5 // pred_check_branch
      %670 = sbr.rel (%p668) target = $region64
    $region63: #{encoder_cnn_small_forward.5} parent=5 // pred_region
      %s671 = ssub.s32 %s15, 2
      // Predicated region
      $region65: #{encoder_cnn_small_forward.5} parent=63 // pred_check
        %p672 = pneg %p238
      $region66: #{encoder_cnn_small_forward.5} parent=63 // pred_check_branch
        %674 = sbr.rel (%p672) target = $region68
      $region67: #{encoder_cnn_small_forward.5} parent=63 // pred_region
        %s675 = smul.u32 2, %s21
        %p676 = scmp.lt.s32.totalorder %s675, 3
        %s677 = scalar_select %p676, %s675, 3
        %s678 = smul.addr %s677, 4
        %s679 = scalar_lea.vmem %s9, %s678
      $region68: #{encoder_cnn_small_forward.5} parent=63 // pred_fallthru
        _
    $region64: #{encoder_cnn_small_forward.5} parent=5 // pred_fallthru
      _
  $region6: #{encoder_cnn_small_forward.5} parent=0 // loop_footer
    %s19 = sadd.s32 1, %s15
  $region7: #{encoder_cnn_small_forward.5} parent=0 // loop_footer_branch
    %14 = sbr.rel target = $region3
  $region8: #{encoder_cnn_small_forward.5} parent=0 // loop_exit
    _

</llo_original>
